<compile_context>
chip_gen: v7x
topology: tpu7x:2x2x1
jax: 0.10.0
libtpu: 0.0.40
codegen_flags: <defaults>
</compile_context>

<pallas_src>
import functools

import jax
import jax.numpy as jnp
from jax.experimental import pallas as pl
from jax.experimental.pallas import tpu as pltpu


def _bigru_linear_kernel(
    x_ref,          # (T*Bp, nIn)   time-major rows: row = t*Bp + b  (Bp = batch padded to 8)
    wih_ref,        # (nIn, 2*Gp)   [fwd gates r|z|n|pad, bwd gates r|z|n|pad]
    bih_ref,        # (1, 2*Gp)
    whhf_ref,       # (H, Gp)
    bhhf_ref,       # (1, Gp)
    whhb_ref,       # (H, Gp)
    bhhb_ref,       # (1, Gp)
    wef_ref,        # (H, Np)       Np = nOut padded to 128 lanes
    web_ref,        # (H, Np)
    be_ref,         # (1, Np)
    out_ref,        # (T*Bp, Np)
    *, B, T, H,
):
    Gp = whhf_ref.shape[1]

    # --- Hoisted input projections: both directions, all timesteps, one matmul. ---
    gi = (jnp.dot(x_ref[...], wih_ref[...], preferred_element_type=jnp.float32)
          + bih_ref[...])                      # (T*Bp, 2*Gp)

    whh_f = whhf_ref[...]
    bhh_f = bhhf_ref[...]
    whh_b = whhb_ref[...]
    bhh_b = bhhb_ref[...]

    def cell(gi_t, h_prev, whh, bhh):
        # Single fused hidden-state matmul per step (r,z,n gates packed along lanes).
        gh = jnp.dot(h_prev, whh, preferred_element_type=jnp.float32) + bhh   # (Bp, Gp)
        rz = jax.nn.sigmoid(gi_t[:, :2 * H] + gh[:, :2 * H])
        r = rz[:, :H]
        z = rz[:, H:2 * H]
        n = jnp.tanh(gi_t[:, 2 * H:3 * H] + r * gh[:, 2 * H:3 * H])
        return (1.0 - z) * n + z * h_prev

    # --- Interleaved forward/backward recurrences (independent carry chains). ---
    h_f = jnp.zeros((B, H), jnp.float32)
    h_b = jnp.zeros((B, H), jnp.float32)
    hs_f = [None] * T
    hs_b = [None] * T
    for k in range(T):                      # static, unrolled (T is small)
        tf = k
        tb = T - 1 - k
        # Each slab starts at a multiple of Bp=8 rows -> (8,128)-tile-aligned slices.
        h_f = cell(gi[tf * B:(tf + 1) * B, :Gp], h_f, whh_f, bhh_f)
        h_b = cell(gi[tb * B:(tb + 1) * B, Gp:], h_b, whh_b, bhh_b)
        hs_f[tf] = h_f
        hs_b[tb] = h_b

    # --- Output Linear fused once over all timesteps; single lane-dense store. ---
    hf_all = jnp.concatenate(hs_f, axis=0)  # (T*Bp, H)  sublane-tile aligned pieces
    hb_all = jnp.concatenate(hs_b, axis=0)  # (T*Bp, H)
    out_ref[...] = (
        jnp.dot(hf_all, wef_ref[...], preferred_element_type=jnp.float32)
        + jnp.dot(hb_all, web_ref[...], preferred_element_type=jnp.float32)
        + be_ref[...])


def bidirectional_lstm_forward(x, p):
    """x: (B, T, nIn) batch-first, like the PyTorch module. Returns (B, T, nOut)."""
    B, T, nIn = x.shape
    H = p["wemb_f"].shape[0]
    nOut = p["n_out"]
    Np = p["bemb"].shape[-1]

    # Pad batch to a full sublane tile so each timestep is an aligned (8, lanes) slab.
    Bp = ((B + 7) // 8) * 8
    x_p = jnp.pad(x, ((0, Bp - B), (0, 0), (0, 0))) if Bp != B else x

    # Time-major 2D view so per-timestep rows are contiguous, tile-aligned sublane slabs.
    x2d = jnp.transpose(x_p, (1, 0, 2)).reshape(T * Bp, nIn)

    kernel = pl.pallas_call(
        functools.partial(_bigru_linear_kernel, B=Bp, T=T, H=H),
        out_shape=jax.ShapeDtypeStruct((T * Bp, Np), jnp.float32),
        in_specs=[pl.BlockSpec(memory_space=pltpu.MemorySpace.VMEM)] * 10,
        out_specs=pl.BlockSpec(memory_space=pltpu.MemorySpace.VMEM),
    )
    out2d = kernel(
        x2d,
        p["wih_all"], p["bih_all"],
        p["whh_f"], p["bhh_f"],
        p["whh_b"], p["bhh_b"],
        p["wemb_f"], p["wemb_b"], p["bemb"],
    )
    # Drop batch / lane padding, back to batch-first.
    return out2d.reshape(T, Bp, Np)[:, :B, :nOut].transpose(1, 0, 2)


def init_params(key, nIn, nHidden, nOut):
    """Deterministic PyTorch-style init, converted to the packed kernel layout."""
    H = nHidden
    Gp = ((3 * H + 127) // 128) * 128       # 3H padded up to a lane multiple (96 -> 128)
    Np = ((nOut + 127) // 128) * 128        # nOut padded up to a lane multiple (16 -> 128)
    ks = jax.random.split(key, 10)
    b_rnn = 1.0 / (H ** 0.5)
    b_lin = 1.0 / ((2 * H) ** 0.5)

    def unif(k_, shape, bound):
        return jax.random.uniform(k_, shape, jnp.float32, -bound, bound)

    # PyTorch shapes: weight_ih (3H, nIn), weight_hh (3H, H), biases (3H,); gate order r,z,n.
    w_ih_f = unif(ks[0], (3 * H, nIn), b_rnn)
    w_hh_f = unif(ks[1], (3 * H, H), b_rnn)
    b_ih_f = unif(ks[2], (3 * H,), b_rnn)
    b_hh_f = unif(ks[3], (3 * H,), b_rnn)
    w_ih_b = unif(ks[4], (3 * H, nIn), b_rnn)
    w_hh_b = unif(ks[5], (3 * H, H), b_rnn)
    b_ih_b = unif(ks[6], (3 * H,), b_rnn)
    b_hh_b = unif(ks[7], (3 * H,), b_rnn)
    w_emb = unif(ks[8], (nOut, 2 * H), b_lin)   # nn.Linear weight (nOut, 2H)
    b_emb = unif(ks[9], (nOut,), b_lin)

    def pack_w(w, in_dim):
        # (3H, in_dim) -> per-gate transposed -> (in_dim, Gp) with gates at lanes [g*H:(g+1)*H].
        wt = jnp.transpose(w.reshape(3, H, in_dim), (0, 2, 1))   # (3, in_dim, H)
        packed = jnp.zeros((in_dim, Gp), jnp.float32)
        for g in range(3):
            packed = packed.at[:, g * H:(g + 1) * H].set(wt[g])
        return packed

    def pack_b(b):
        return jnp.zeros((1, Gp), jnp.float32).at[:, :3 * H].set(b.reshape(1, 3 * H))

    def pad_lanes(w, n):
        # (H, nOut) -> (H, Np) zero-padded so the final matmul/store is lane-dense.
        return jnp.zeros((w.shape[0], Np), jnp.float32).at[:, :n].set(w)

    return dict(
        wih_all=jnp.concatenate([pack_w(w_ih_f, nIn), pack_w(w_ih_b, nIn)], axis=1),
        bih_all=jnp.concatenate([pack_b(b_ih_f), pack_b(b_ih_b)], axis=1),
        whh_f=pack_w(w_hh_f, H), bhh_f=pack_b(b_hh_f),
        whh_b=pack_w(w_hh_b, H), bhh_b=pack_b(b_hh_b),
        wemb_f=pad_lanes(jnp.transpose(w_emb[:, :H]), nOut),   # (H, Np)  fwd half of Linear
        wemb_b=pad_lanes(jnp.transpose(w_emb[:, H:]), nOut),   # (H, Np)  bwd half of Linear
        bemb=jnp.zeros((1, Np), jnp.float32).at[:, :nOut].set(b_emb.reshape(1, nOut)),
        n_out=nOut,
    )


def reference_forward(x, p):
    """Pure-JAX reference with identical semantics (PyTorch GRU equations)."""
    B, T, _ = x.shape
    H = p["wemb_f"].shape[0]
    Gp = p["whh_f"].shape[1]
    nOut = p["n_out"]
    hp = jax.lax.Precision.HIGHEST

    def run_dir(wih, bih, whh, bhh, reverse):
        h = jnp.zeros((B, H), jnp.float32)
        outs = [None] * T
        order = range(T - 1, -1, -1) if reverse else range(T)
        for t in order:
            gi = jnp.dot(x[:, t, :], wih, precision=hp) + bih
            gh = jnp.dot(h, whh, precision=hp) + bhh
            r = jax.nn.sigmoid(gi[:, :H] + gh[:, :H])
            z = jax.nn.sigmoid(gi[:, H:2 * H] + gh[:, H:2 * H])
            n = jnp.tanh(gi[:, 2 * H:3 * H] + r * gh[:, 2 * H:3 * H])
            h = (1.0 - z) * n + z * h
            outs[t] = h
        return jnp.stack(outs, axis=1)   # (B, T, H)

    rec_f = run_dir(p["wih_all"][:, :Gp], p["bih_all"][:, :Gp],
                    p["whh_f"], p["bhh_f"], reverse=False)
    rec_b = run_dir(p["wih_all"][:, Gp:], p["bih_all"][:, Gp:],
                    p["whh_b"], p["bhh_b"], reverse=True)
    return (jnp.einsum("bth,ho->bto", rec_f, p["wemb_f"][:, :nOut], precision=hp)
            + jnp.einsum("bth,ho->bto", rec_b, p["wemb_b"][:, :nOut], precision=hp)
            + p["bemb"][:, :nOut])


if __name__ == "__main__":
    B, T, nIn, nHidden, nOut = 2, 8, 32, 32, 16

    key = jax.random.PRNGKey(0)
    k_x, k_p = jax.random.split(key)
    x = jax.random.normal(k_x, (B, T, nIn), dtype=jnp.float32)
    params = init_params(k_p, nIn, nHidden, nOut)

    out = bidirectional_lstm_forward(x, params)
    out = jax.block_until_ready(out)

    ref = jax.block_until_ready(reference_forward(x, params))
    assert out.shape == (B, T, nOut), out.shape
    assert jnp.allclose(out, ref, rtol=2e-3, atol=2e-3), float(jnp.max(jnp.abs(out - ref)))

    print("KERNEL_OK")
</pallas_src>

<mosaic_0001>
module attributes {stable_mosaic.version = 11 : i64} {
  func.func @_bigru_linear_kernel(%arg0: memref<64x32xf32, #tpu.memory_space<vmem>>, %arg1: memref<32x256xf32, #tpu.memory_space<vmem>>, %arg2: memref<1x256xf32, #tpu.memory_space<vmem>>, %arg3: memref<32x128xf32, #tpu.memory_space<vmem>>, %arg4: memref<1x128xf32, #tpu.memory_space<vmem>>, %arg5: memref<32x128xf32, #tpu.memory_space<vmem>>, %arg6: memref<1x128xf32, #tpu.memory_space<vmem>>, %arg7: memref<32x128xf32, #tpu.memory_space<vmem>>, %arg8: memref<32x128xf32, #tpu.memory_space<vmem>>, %arg9: memref<1x128xf32, #tpu.memory_space<vmem>>, %arg10: memref<64x128xf32, #tpu.memory_space<vmem>>) attributes {dimension_semantics = [], scalar_prefetch = 0 : i64, scratch_operands = 0 : i64, tpu.core_type = #tpu.core_type<tc>} {
    %c0 = arith.constant 0 : index
    %c0_0 = arith.constant 0 : index
    %0 = vector.load %arg0[%c0, %c0_0] : memref<64x32xf32, #tpu.memory_space<vmem>>, vector<64x32xf32>
    %c0_1 = arith.constant 0 : index
    %c0_2 = arith.constant 0 : index
    %1 = vector.load %arg1[%c0_1, %c0_2] : memref<32x256xf32, #tpu.memory_space<vmem>>, vector<32x256xf32>
    %cst = arith.constant dense<0.000000e+00> : vector<64x256xf32>
    %2 = tpu.matmul %0, %1, %cst {dimension_numbers = #tpu.dot_dimension_numbers<[1], [0], [0], [1], [0, 0, 1, 1], [], []>} : vector<64x32xf32>, vector<32x256xf32>, vector<64x256xf32> -> vector<64x256xf32>
    %c0_3 = arith.constant 0 : index
    %c0_4 = arith.constant 0 : index
    %3 = vector.load %arg2[%c0_3, %c0_4] : memref<1x256xf32, #tpu.memory_space<vmem>>, vector<1x256xf32>
    %4 = vector.broadcast %3 : vector<1x256xf32> to vector<64x256xf32>
    %5 = arith.addf %2, %4 : vector<64x256xf32>
    %c0_5 = arith.constant 0 : index
    %c0_6 = arith.constant 0 : index
    %6 = vector.load %arg3[%c0_5, %c0_6] : memref<32x128xf32, #tpu.memory_space<vmem>>, vector<32x128xf32>
    %c0_7 = arith.constant 0 : index
    %c0_8 = arith.constant 0 : index
    %7 = vector.load %arg4[%c0_7, %c0_8] : memref<1x128xf32, #tpu.memory_space<vmem>>, vector<1x128xf32>
    %c0_9 = arith.constant 0 : index
    %c0_10 = arith.constant 0 : index
    %8 = vector.load %arg5[%c0_9, %c0_10] : memref<32x128xf32, #tpu.memory_space<vmem>>, vector<32x128xf32>
    %c0_11 = arith.constant 0 : index
    %c0_12 = arith.constant 0 : index
    %9 = vector.load %arg6[%c0_11, %c0_12] : memref<1x128xf32, #tpu.memory_space<vmem>>, vector<1x128xf32>
    %cst_13 = arith.constant 0.000000e+00 : f32
    %10 = vector.broadcast %cst_13 : f32 to vector<8x32xf32>
    %cst_14 = arith.constant 0.000000e+00 : f32
    %11 = vector.broadcast %cst_14 : f32 to vector<8x32xf32>
    %12 = vector.extract_strided_slice %5 {offsets = [0, 0], sizes = [8, 128], strides = [1, 1]} : vector<64x256xf32> to vector<8x128xf32>
    %cst_15 = arith.constant dense<0.000000e+00> : vector<8x128xf32>
    %13 = tpu.matmul %10, %6, %cst_15 {dimension_numbers = #tpu.dot_dimension_numbers<[1], [0], [0], [1], [0, 0, 1, 1], [], []>} : vector<8x32xf32>, vector<32x128xf32>, vector<8x128xf32> -> vector<8x128xf32>
    %14 = vector.broadcast %7 : vector<1x128xf32> to vector<8x128xf32>
    %15 = arith.addf %13, %14 : vector<8x128xf32>
    %16 = vector.extract_strided_slice %12 {offsets = [0, 0], sizes = [8, 64], strides = [1, 1]} : vector<8x128xf32> to vector<8x64xf32>
    %17 = vector.extract_strided_slice %15 {offsets = [0, 0], sizes = [8, 64], strides = [1, 1]} : vector<8x128xf32> to vector<8x64xf32>
    %18 = arith.addf %16, %17 : vector<8x64xf32>
    %19 = arith.negf %18 : vector<8x64xf32>
    %20 = math.exp %19 : vector<8x64xf32>
    %cst_16 = arith.constant 1.000000e+00 : f32
    %21 = vector.broadcast %cst_16 : f32 to vector<8x64xf32>
    %22 = arith.addf %21, %20 : vector<8x64xf32>
    %23 = arith.divf %21, %22 : vector<8x64xf32>
    %24 = vector.extract_strided_slice %23 {offsets = [0, 0], sizes = [8, 32], strides = [1, 1]} : vector<8x64xf32> to vector<8x32xf32>
    %25 = vector.extract_strided_slice %23 {offsets = [0, 32], sizes = [8, 32], strides = [1, 1]} : vector<8x64xf32> to vector<8x32xf32>
    %26 = vector.extract_strided_slice %12 {offsets = [0, 64], sizes = [8, 32], strides = [1, 1]} : vector<8x128xf32> to vector<8x32xf32>
    %27 = vector.extract_strided_slice %15 {offsets = [0, 64], sizes = [8, 32], strides = [1, 1]} : vector<8x128xf32> to vector<8x32xf32>
    %28 = arith.mulf %24, %27 : vector<8x32xf32>
    %29 = arith.addf %26, %28 : vector<8x32xf32>
    %30 = math.tanh %29 : vector<8x32xf32>
    %cst_17 = arith.constant 1.000000e+00 : f32
    %31 = vector.broadcast %cst_17 : f32 to vector<8x32xf32>
    %32 = arith.subf %31, %25 : vector<8x32xf32>
    %33 = arith.mulf %32, %30 : vector<8x32xf32>
    %34 = arith.mulf %25, %10 : vector<8x32xf32>
    %35 = arith.addf %33, %34 : vector<8x32xf32>
    %36 = vector.extract_strided_slice %5 {offsets = [56, 128], sizes = [8, 128], strides = [1, 1]} : vector<64x256xf32> to vector<8x128xf32>
    %cst_18 = arith.constant dense<0.000000e+00> : vector<8x128xf32>
    %37 = tpu.matmul %11, %8, %cst_18 {dimension_numbers = #tpu.dot_dimension_numbers<[1], [0], [0], [1], [0, 0, 1, 1], [], []>} : vector<8x32xf32>, vector<32x128xf32>, vector<8x128xf32> -> vector<8x128xf32>
    %38 = vector.broadcast %9 : vector<1x128xf32> to vector<8x128xf32>
    %39 = arith.addf %37, %38 : vector<8x128xf32>
    %40 = vector.extract_strided_slice %36 {offsets = [0, 0], sizes = [8, 64], strides = [1, 1]} : vector<8x128xf32> to vector<8x64xf32>
    %41 = vector.extract_strided_slice %39 {offsets = [0, 0], sizes = [8, 64], strides = [1, 1]} : vector<8x128xf32> to vector<8x64xf32>
    %42 = arith.addf %40, %41 : vector<8x64xf32>
    %43 = arith.negf %42 : vector<8x64xf32>
    %44 = math.exp %43 : vector<8x64xf32>
    %cst_19 = arith.constant 1.000000e+00 : f32
    %45 = vector.broadcast %cst_19 : f32 to vector<8x64xf32>
    %46 = arith.addf %45, %44 : vector<8x64xf32>
    %47 = arith.divf %45, %46 : vector<8x64xf32>
    %48 = vector.extract_strided_slice %47 {offsets = [0, 0], sizes = [8, 32], strides = [1, 1]} : vector<8x64xf32> to vector<8x32xf32>
    %49 = vector.extract_strided_slice %47 {offsets = [0, 32], sizes = [8, 32], strides = [1, 1]} : vector<8x64xf32> to vector<8x32xf32>
    %50 = vector.extract_strided_slice %36 {offsets = [0, 64], sizes = [8, 32], strides = [1, 1]} : vector<8x128xf32> to vector<8x32xf32>
    %51 = vector.extract_strided_slice %39 {offsets = [0, 64], sizes = [8, 32], strides = [1, 1]} : vector<8x128xf32> to vector<8x32xf32>
    %52 = arith.mulf %48, %51 : vector<8x32xf32>
    %53 = arith.addf %50, %52 : vector<8x32xf32>
    %54 = math.tanh %53 : vector<8x32xf32>
    %cst_20 = arith.constant 1.000000e+00 : f32
    %55 = vector.broadcast %cst_20 : f32 to vector<8x32xf32>
    %56 = arith.subf %55, %49 : vector<8x32xf32>
    %57 = arith.mulf %56, %54 : vector<8x32xf32>
    %58 = arith.mulf %49, %11 : vector<8x32xf32>
    %59 = arith.addf %57, %58 : vector<8x32xf32>
    %60 = vector.extract_strided_slice %5 {offsets = [8, 0], sizes = [8, 128], strides = [1, 1]} : vector<64x256xf32> to vector<8x128xf32>
    %cst_21 = arith.constant dense<0.000000e+00> : vector<8x128xf32>
    %61 = tpu.matmul %35, %6, %cst_21 {dimension_numbers = #tpu.dot_dimension_numbers<[1], [0], [0], [1], [0, 0, 1, 1], [], []>} : vector<8x32xf32>, vector<32x128xf32>, vector<8x128xf32> -> vector<8x128xf32>
    %62 = vector.broadcast %7 : vector<1x128xf32> to vector<8x128xf32>
    %63 = arith.addf %61, %62 : vector<8x128xf32>
    %64 = vector.extract_strided_slice %60 {offsets = [0, 0], sizes = [8, 64], strides = [1, 1]} : vector<8x128xf32> to vector<8x64xf32>
    %65 = vector.extract_strided_slice %63 {offsets = [0, 0], sizes = [8, 64], strides = [1, 1]} : vector<8x128xf32> to vector<8x64xf32>
    %66 = arith.addf %64, %65 : vector<8x64xf32>
    %67 = arith.negf %66 : vector<8x64xf32>
    %68 = math.exp %67 : vector<8x64xf32>
    %cst_22 = arith.constant 1.000000e+00 : f32
    %69 = vector.broadcast %cst_22 : f32 to vector<8x64xf32>
    %70 = arith.addf %69, %68 : vector<8x64xf32>
    %71 = arith.divf %69, %70 : vector<8x64xf32>
    %72 = vector.extract_strided_slice %71 {offsets = [0, 0], sizes = [8, 32], strides = [1, 1]} : vector<8x64xf32> to vector<8x32xf32>
    %73 = vector.extract_strided_slice %71 {offsets = [0, 32], sizes = [8, 32], strides = [1, 1]} : vector<8x64xf32> to vector<8x32xf32>
    %74 = vector.extract_strided_slice %60 {offsets = [0, 64], sizes = [8, 32], strides = [1, 1]} : vector<8x128xf32> to vector<8x32xf32>
    %75 = vector.extract_strided_slice %63 {offsets = [0, 64], sizes = [8, 32], strides = [1, 1]} : vector<8x128xf32> to vector<8x32xf32>
    %76 = arith.mulf %72, %75 : vector<8x32xf32>
    %77 = arith.addf %74, %76 : vector<8x32xf32>
    %78 = math.tanh %77 : vector<8x32xf32>
    %cst_23 = arith.constant 1.000000e+00 : f32
    %79 = vector.broadcast %cst_23 : f32 to vector<8x32xf32>
    %80 = arith.subf %79, %73 : vector<8x32xf32>
    %81 = arith.mulf %80, %78 : vector<8x32xf32>
    %82 = arith.mulf %73, %35 : vector<8x32xf32>
    %83 = arith.addf %81, %82 : vector<8x32xf32>
    %84 = vector.extract_strided_slice %5 {offsets = [48, 128], sizes = [8, 128], strides = [1, 1]} : vector<64x256xf32> to vector<8x128xf32>
    %cst_24 = arith.constant dense<0.000000e+00> : vector<8x128xf32>
    %85 = tpu.matmul %59, %8, %cst_24 {dimension_numbers = #tpu.dot_dimension_numbers<[1], [0], [0], [1], [0, 0, 1, 1], [], []>} : vector<8x32xf32>, vector<32x128xf32>, vector<8x128xf32> -> vector<8x128xf32>
    %86 = vector.broadcast %9 : vector<1x128xf32> to vector<8x128xf32>
    %87 = arith.addf %85, %86 : vector<8x128xf32>
    %88 = vector.extract_strided_slice %84 {offsets = [0, 0], sizes = [8, 64], strides = [1, 1]} : vector<8x128xf32> to vector<8x64xf32>
    %89 = vector.extract_strided_slice %87 {offsets = [0, 0], sizes = [8, 64], strides = [1, 1]} : vector<8x128xf32> to vector<8x64xf32>
    %90 = arith.addf %88, %89 : vector<8x64xf32>
    %91 = arith.negf %90 : vector<8x64xf32>
    %92 = math.exp %91 : vector<8x64xf32>
    %cst_25 = arith.constant 1.000000e+00 : f32
    %93 = vector.broadcast %cst_25 : f32 to vector<8x64xf32>
    %94 = arith.addf %93, %92 : vector<8x64xf32>
    %95 = arith.divf %93, %94 : vector<8x64xf32>
    %96 = vector.extract_strided_slice %95 {offsets = [0, 0], sizes = [8, 32], strides = [1, 1]} : vector<8x64xf32> to vector<8x32xf32>
    %97 = vector.extract_strided_slice %95 {offsets = [0, 32], sizes = [8, 32], strides = [1, 1]} : vector<8x64xf32> to vector<8x32xf32>
    %98 = vector.extract_strided_slice %84 {offsets = [0, 64], sizes = [8, 32], strides = [1, 1]} : vector<8x128xf32> to vector<8x32xf32>
    %99 = vector.extract_strided_slice %87 {offsets = [0, 64], sizes = [8, 32], strides = [1, 1]} : vector<8x128xf32> to vector<8x32xf32>
    %100 = arith.mulf %96, %99 : vector<8x32xf32>
    %101 = arith.addf %98, %100 : vector<8x32xf32>
    %102 = math.tanh %101 : vector<8x32xf32>
    %cst_26 = arith.constant 1.000000e+00 : f32
    %103 = vector.broadcast %cst_26 : f32 to vector<8x32xf32>
    %104 = arith.subf %103, %97 : vector<8x32xf32>
    %105 = arith.mulf %104, %102 : vector<8x32xf32>
    %106 = arith.mulf %97, %59 : vector<8x32xf32>
    %107 = arith.addf %105, %106 : vector<8x32xf32>
    %108 = vector.extract_strided_slice %5 {offsets = [16, 0], sizes = [8, 128], strides = [1, 1]} : vector<64x256xf32> to vector<8x128xf32>
    %cst_27 = arith.constant dense<0.000000e+00> : vector<8x128xf32>
    %109 = tpu.matmul %83, %6, %cst_27 {dimension_numbers = #tpu.dot_dimension_numbers<[1], [0], [0], [1], [0, 0, 1, 1], [], []>} : vector<8x32xf32>, vector<32x128xf32>, vector<8x128xf32> -> vector<8x128xf32>
    %110 = vector.broadcast %7 : vector<1x128xf32> to vector<8x128xf32>
    %111 = arith.addf %109, %110 : vector<8x128xf32>
    %112 = vector.extract_strided_slice %108 {offsets = [0, 0], sizes = [8, 64], strides = [1, 1]} : vector<8x128xf32> to vector<8x64xf32>
    %113 = vector.extract_strided_slice %111 {offsets = [0, 0], sizes = [8, 64], strides = [1, 1]} : vector<8x128xf32> to vector<8x64xf32>
    %114 = arith.addf %112, %113 : vector<8x64xf32>
    %115 = arith.negf %114 : vector<8x64xf32>
    %116 = math.exp %115 : vector<8x64xf32>
    %cst_28 = arith.constant 1.000000e+00 : f32
    %117 = vector.broadcast %cst_28 : f32 to vector<8x64xf32>
    %118 = arith.addf %117, %116 : vector<8x64xf32>
    %119 = arith.divf %117, %118 : vector<8x64xf32>
    %120 = vector.extract_strided_slice %119 {offsets = [0, 0], sizes = [8, 32], strides = [1, 1]} : vector<8x64xf32> to vector<8x32xf32>
    %121 = vector.extract_strided_slice %119 {offsets = [0, 32], sizes = [8, 32], strides = [1, 1]} : vector<8x64xf32> to vector<8x32xf32>
    %122 = vector.extract_strided_slice %108 {offsets = [0, 64], sizes = [8, 32], strides = [1, 1]} : vector<8x128xf32> to vector<8x32xf32>
    %123 = vector.extract_strided_slice %111 {offsets = [0, 64], sizes = [8, 32], strides = [1, 1]} : vector<8x128xf32> to vector<8x32xf32>
    %124 = arith.mulf %120, %123 : vector<8x32xf32>
    %125 = arith.addf %122, %124 : vector<8x32xf32>
    %126 = math.tanh %125 : vector<8x32xf32>
    %cst_29 = arith.constant 1.000000e+00 : f32
    %127 = vector.broadcast %cst_29 : f32 to vector<8x32xf32>
    %128 = arith.subf %127, %121 : vector<8x32xf32>
    %129 = arith.mulf %128, %126 : vector<8x32xf32>
    %130 = arith.mulf %121, %83 : vector<8x32xf32>
    %131 = arith.addf %129, %130 : vector<8x32xf32>
    %132 = vector.extract_strided_slice %5 {offsets = [40, 128], sizes = [8, 128], strides = [1, 1]} : vector<64x256xf32> to vector<8x128xf32>
    %cst_30 = arith.constant dense<0.000000e+00> : vector<8x128xf32>
    %133 = tpu.matmul %107, %8, %cst_30 {dimension_numbers = #tpu.dot_dimension_numbers<[1], [0], [0], [1], [0, 0, 1, 1], [], []>} : vector<8x32xf32>, vector<32x128xf32>, vector<8x128xf32> -> vector<8x128xf32>
    %134 = vector.broadcast %9 : vector<1x128xf32> to vector<8x128xf32>
    %135 = arith.addf %133, %134 : vector<8x128xf32>
    %136 = vector.extract_strided_slice %132 {offsets = [0, 0], sizes = [8, 64], strides = [1, 1]} : vector<8x128xf32> to vector<8x64xf32>
    %137 = vector.extract_strided_slice %135 {offsets = [0, 0], sizes = [8, 64], strides = [1, 1]} : vector<8x128xf32> to vector<8x64xf32>
    %138 = arith.addf %136, %137 : vector<8x64xf32>
    %139 = arith.negf %138 : vector<8x64xf32>
    %140 = math.exp %139 : vector<8x64xf32>
    %cst_31 = arith.constant 1.000000e+00 : f32
    %141 = vector.broadcast %cst_31 : f32 to vector<8x64xf32>
    %142 = arith.addf %141, %140 : vector<8x64xf32>
    %143 = arith.divf %141, %142 : vector<8x64xf32>
    %144 = vector.extract_strided_slice %143 {offsets = [0, 0], sizes = [8, 32], strides = [1, 1]} : vector<8x64xf32> to vector<8x32xf32>
    %145 = vector.extract_strided_slice %143 {offsets = [0, 32], sizes = [8, 32], strides = [1, 1]} : vector<8x64xf32> to vector<8x32xf32>
    %146 = vector.extract_strided_slice %132 {offsets = [0, 64], sizes = [8, 32], strides = [1, 1]} : vector<8x128xf32> to vector<8x32xf32>
    %147 = vector.extract_strided_slice %135 {offsets = [0, 64], sizes = [8, 32], strides = [1, 1]} : vector<8x128xf32> to vector<8x32xf32>
    %148 = arith.mulf %144, %147 : vector<8x32xf32>
    %149 = arith.addf %146, %148 : vector<8x32xf32>
    %150 = math.tanh %149 : vector<8x32xf32>
    %cst_32 = arith.constant 1.000000e+00 : f32
    %151 = vector.broadcast %cst_32 : f32 to vector<8x32xf32>
    %152 = arith.subf %151, %145 : vector<8x32xf32>
    %153 = arith.mulf %152, %150 : vector<8x32xf32>
    %154 = arith.mulf %145, %107 : vector<8x32xf32>
    %155 = arith.addf %153, %154 : vector<8x32xf32>
    %156 = vector.extract_strided_slice %5 {offsets = [24, 0], sizes = [8, 128], strides = [1, 1]} : vector<64x256xf32> to vector<8x128xf32>
    %cst_33 = arith.constant dense<0.000000e+00> : vector<8x128xf32>
    %157 = tpu.matmul %131, %6, %cst_33 {dimension_numbers = #tpu.dot_dimension_numbers<[1], [0], [0], [1], [0, 0, 1, 1], [], []>} : vector<8x32xf32>, vector<32x128xf32>, vector<8x128xf32> -> vector<8x128xf32>
    %158 = vector.broadcast %7 : vector<1x128xf32> to vector<8x128xf32>
    %159 = arith.addf %157, %158 : vector<8x128xf32>
    %160 = vector.extract_strided_slice %156 {offsets = [0, 0], sizes = [8, 64], strides = [1, 1]} : vector<8x128xf32> to vector<8x64xf32>
    %161 = vector.extract_strided_slice %159 {offsets = [0, 0], sizes = [8, 64], strides = [1, 1]} : vector<8x128xf32> to vector<8x64xf32>
    %162 = arith.addf %160, %161 : vector<8x64xf32>
    %163 = arith.negf %162 : vector<8x64xf32>
    %164 = math.exp %163 : vector<8x64xf32>
    %cst_34 = arith.constant 1.000000e+00 : f32
    %165 = vector.broadcast %cst_34 : f32 to vector<8x64xf32>
    %166 = arith.addf %165, %164 : vector<8x64xf32>
    %167 = arith.divf %165, %166 : vector<8x64xf32>
    %168 = vector.extract_strided_slice %167 {offsets = [0, 0], sizes = [8, 32], strides = [1, 1]} : vector<8x64xf32> to vector<8x32xf32>
    %169 = vector.extract_strided_slice %167 {offsets = [0, 32], sizes = [8, 32], strides = [1, 1]} : vector<8x64xf32> to vector<8x32xf32>
    %170 = vector.extract_strided_slice %156 {offsets = [0, 64], sizes = [8, 32], strides = [1, 1]} : vector<8x128xf32> to vector<8x32xf32>
    %171 = vector.extract_strided_slice %159 {offsets = [0, 64], sizes = [8, 32], strides = [1, 1]} : vector<8x128xf32> to vector<8x32xf32>
    %172 = arith.mulf %168, %171 : vector<8x32xf32>
    %173 = arith.addf %170, %172 : vector<8x32xf32>
    %174 = math.tanh %173 : vector<8x32xf32>
    %cst_35 = arith.constant 1.000000e+00 : f32
    %175 = vector.broadcast %cst_35 : f32 to vector<8x32xf32>
    %176 = arith.subf %175, %169 : vector<8x32xf32>
    %177 = arith.mulf %176, %174 : vector<8x32xf32>
    %178 = arith.mulf %169, %131 : vector<8x32xf32>
    %179 = arith.addf %177, %178 : vector<8x32xf32>
    %180 = vector.extract_strided_slice %5 {offsets = [32, 128], sizes = [8, 128], strides = [1, 1]} : vector<64x256xf32> to vector<8x128xf32>
    %cst_36 = arith.constant dense<0.000000e+00> : vector<8x128xf32>
    %181 = tpu.matmul %155, %8, %cst_36 {dimension_numbers = #tpu.dot_dimension_numbers<[1], [0], [0], [1], [0, 0, 1, 1], [], []>} : vector<8x32xf32>, vector<32x128xf32>, vector<8x128xf32> -> vector<8x128xf32>
    %182 = vector.broadcast %9 : vector<1x128xf32> to vector<8x128xf32>
    %183 = arith.addf %181, %182 : vector<8x128xf32>
    %184 = vector.extract_strided_slice %180 {offsets = [0, 0], sizes = [8, 64], strides = [1, 1]} : vector<8x128xf32> to vector<8x64xf32>
    %185 = vector.extract_strided_slice %183 {offsets = [0, 0], sizes = [8, 64], strides = [1, 1]} : vector<8x128xf32> to vector<8x64xf32>
    %186 = arith.addf %184, %185 : vector<8x64xf32>
    %187 = arith.negf %186 : vector<8x64xf32>
    %188 = math.exp %187 : vector<8x64xf32>
    %cst_37 = arith.constant 1.000000e+00 : f32
    %189 = vector.broadcast %cst_37 : f32 to vector<8x64xf32>
    %190 = arith.addf %189, %188 : vector<8x64xf32>
    %191 = arith.divf %189, %190 : vector<8x64xf32>
    %192 = vector.extract_strided_slice %191 {offsets = [0, 0], sizes = [8, 32], strides = [1, 1]} : vector<8x64xf32> to vector<8x32xf32>
    %193 = vector.extract_strided_slice %191 {offsets = [0, 32], sizes = [8, 32], strides = [1, 1]} : vector<8x64xf32> to vector<8x32xf32>
    %194 = vector.extract_strided_slice %180 {offsets = [0, 64], sizes = [8, 32], strides = [1, 1]} : vector<8x128xf32> to vector<8x32xf32>
    %195 = vector.extract_strided_slice %183 {offsets = [0, 64], sizes = [8, 32], strides = [1, 1]} : vector<8x128xf32> to vector<8x32xf32>
    %196 = arith.mulf %192, %195 : vector<8x32xf32>
    %197 = arith.addf %194, %196 : vector<8x32xf32>
    %198 = math.tanh %197 : vector<8x32xf32>
    %cst_38 = arith.constant 1.000000e+00 : f32
    %199 = vector.broadcast %cst_38 : f32 to vector<8x32xf32>
    %200 = arith.subf %199, %193 : vector<8x32xf32>
    %201 = arith.mulf %200, %198 : vector<8x32xf32>
    %202 = arith.mulf %193, %155 : vector<8x32xf32>
    %203 = arith.addf %201, %202 : vector<8x32xf32>
    %204 = vector.extract_strided_slice %5 {offsets = [32, 0], sizes = [8, 128], strides = [1, 1]} : vector<64x256xf32> to vector<8x128xf32>
    %cst_39 = arith.constant dense<0.000000e+00> : vector<8x128xf32>
    %205 = tpu.matmul %179, %6, %cst_39 {dimension_numbers = #tpu.dot_dimension_numbers<[1], [0], [0], [1], [0, 0, 1, 1], [], []>} : vector<8x32xf32>, vector<32x128xf32>, vector<8x128xf32> -> vector<8x128xf32>
    %206 = vector.broadcast %7 : vector<1x128xf32> to vector<8x128xf32>
    %207 = arith.addf %205, %206 : vector<8x128xf32>
    %208 = vector.extract_strided_slice %204 {offsets = [0, 0], sizes = [8, 64], strides = [1, 1]} : vector<8x128xf32> to vector<8x64xf32>
    %209 = vector.extract_strided_slice %207 {offsets = [0, 0], sizes = [8, 64], strides = [1, 1]} : vector<8x128xf32> to vector<8x64xf32>
    %210 = arith.addf %208, %209 : vector<8x64xf32>
    %211 = arith.negf %210 : vector<8x64xf32>
    %212 = math.exp %211 : vector<8x64xf32>
    %cst_40 = arith.constant 1.000000e+00 : f32
    %213 = vector.broadcast %cst_40 : f32 to vector<8x64xf32>
    %214 = arith.addf %213, %212 : vector<8x64xf32>
    %215 = arith.divf %213, %214 : vector<8x64xf32>
    %216 = vector.extract_strided_slice %215 {offsets = [0, 0], sizes = [8, 32], strides = [1, 1]} : vector<8x64xf32> to vector<8x32xf32>
    %217 = vector.extract_strided_slice %215 {offsets = [0, 32], sizes = [8, 32], strides = [1, 1]} : vector<8x64xf32> to vector<8x32xf32>
    %218 = vector.extract_strided_slice %204 {offsets = [0, 64], sizes = [8, 32], strides = [1, 1]} : vector<8x128xf32> to vector<8x32xf32>
    %219 = vector.extract_strided_slice %207 {offsets = [0, 64], sizes = [8, 32], strides = [1, 1]} : vector<8x128xf32> to vector<8x32xf32>
    %220 = arith.mulf %216, %219 : vector<8x32xf32>
    %221 = arith.addf %218, %220 : vector<8x32xf32>
    %222 = math.tanh %221 : vector<8x32xf32>
    %cst_41 = arith.constant 1.000000e+00 : f32
    %223 = vector.broadcast %cst_41 : f32 to vector<8x32xf32>
    %224 = arith.subf %223, %217 : vector<8x32xf32>
    %225 = arith.mulf %224, %222 : vector<8x32xf32>
    %226 = arith.mulf %217, %179 : vector<8x32xf32>
    %227 = arith.addf %225, %226 : vector<8x32xf32>
    %228 = vector.extract_strided_slice %5 {offsets = [24, 128], sizes = [8, 128], strides = [1, 1]} : vector<64x256xf32> to vector<8x128xf32>
    %cst_42 = arith.constant dense<0.000000e+00> : vector<8x128xf32>
    %229 = tpu.matmul %203, %8, %cst_42 {dimension_numbers = #tpu.dot_dimension_numbers<[1], [0], [0], [1], [0, 0, 1, 1], [], []>} : vector<8x32xf32>, vector<32x128xf32>, vector<8x128xf32> -> vector<8x128xf32>
    %230 = vector.broadcast %9 : vector<1x128xf32> to vector<8x128xf32>
    %231 = arith.addf %229, %230 : vector<8x128xf32>
    %232 = vector.extract_strided_slice %228 {offsets = [0, 0], sizes = [8, 64], strides = [1, 1]} : vector<8x128xf32> to vector<8x64xf32>
    %233 = vector.extract_strided_slice %231 {offsets = [0, 0], sizes = [8, 64], strides = [1, 1]} : vector<8x128xf32> to vector<8x64xf32>
    %234 = arith.addf %232, %233 : vector<8x64xf32>
    %235 = arith.negf %234 : vector<8x64xf32>
    %236 = math.exp %235 : vector<8x64xf32>
    %cst_43 = arith.constant 1.000000e+00 : f32
    %237 = vector.broadcast %cst_43 : f32 to vector<8x64xf32>
    %238 = arith.addf %237, %236 : vector<8x64xf32>
    %239 = arith.divf %237, %238 : vector<8x64xf32>
    %240 = vector.extract_strided_slice %239 {offsets = [0, 0], sizes = [8, 32], strides = [1, 1]} : vector<8x64xf32> to vector<8x32xf32>
    %241 = vector.extract_strided_slice %239 {offsets = [0, 32], sizes = [8, 32], strides = [1, 1]} : vector<8x64xf32> to vector<8x32xf32>
    %242 = vector.extract_strided_slice %228 {offsets = [0, 64], sizes = [8, 32], strides = [1, 1]} : vector<8x128xf32> to vector<8x32xf32>
    %243 = vector.extract_strided_slice %231 {offsets = [0, 64], sizes = [8, 32], strides = [1, 1]} : vector<8x128xf32> to vector<8x32xf32>
    %244 = arith.mulf %240, %243 : vector<8x32xf32>
    %245 = arith.addf %242, %244 : vector<8x32xf32>
    %246 = math.tanh %245 : vector<8x32xf32>
    %cst_44 = arith.constant 1.000000e+00 : f32
    %247 = vector.broadcast %cst_44 : f32 to vector<8x32xf32>
    %248 = arith.subf %247, %241 : vector<8x32xf32>
    %249 = arith.mulf %248, %246 : vector<8x32xf32>
    %250 = arith.mulf %241, %203 : vector<8x32xf32>
    %251 = arith.addf %249, %250 : vector<8x32xf32>
    %252 = vector.extract_strided_slice %5 {offsets = [40, 0], sizes = [8, 128], strides = [1, 1]} : vector<64x256xf32> to vector<8x128xf32>
    %cst_45 = arith.constant dense<0.000000e+00> : vector<8x128xf32>
    %253 = tpu.matmul %227, %6, %cst_45 {dimension_numbers = #tpu.dot_dimension_numbers<[1], [0], [0], [1], [0, 0, 1, 1], [], []>} : vector<8x32xf32>, vector<32x128xf32>, vector<8x128xf32> -> vector<8x128xf32>
    %254 = vector.broadcast %7 : vector<1x128xf32> to vector<8x128xf32>
    %255 = arith.addf %253, %254 : vector<8x128xf32>
    %256 = vector.extract_strided_slice %252 {offsets = [0, 0], sizes = [8, 64], strides = [1, 1]} : vector<8x128xf32> to vector<8x64xf32>
    %257 = vector.extract_strided_slice %255 {offsets = [0, 0], sizes = [8, 64], strides = [1, 1]} : vector<8x128xf32> to vector<8x64xf32>
    %258 = arith.addf %256, %257 : vector<8x64xf32>
    %259 = arith.negf %258 : vector<8x64xf32>
    %260 = math.exp %259 : vector<8x64xf32>
    %cst_46 = arith.constant 1.000000e+00 : f32
    %261 = vector.broadcast %cst_46 : f32 to vector<8x64xf32>
    %262 = arith.addf %261, %260 : vector<8x64xf32>
    %263 = arith.divf %261, %262 : vector<8x64xf32>
    %264 = vector.extract_strided_slice %263 {offsets = [0, 0], sizes = [8, 32], strides = [1, 1]} : vector<8x64xf32> to vector<8x32xf32>
    %265 = vector.extract_strided_slice %263 {offsets = [0, 32], sizes = [8, 32], strides = [1, 1]} : vector<8x64xf32> to vector<8x32xf32>
    %266 = vector.extract_strided_slice %252 {offsets = [0, 64], sizes = [8, 32], strides = [1, 1]} : vector<8x128xf32> to vector<8x32xf32>
    %267 = vector.extract_strided_slice %255 {offsets = [0, 64], sizes = [8, 32], strides = [1, 1]} : vector<8x128xf32> to vector<8x32xf32>
    %268 = arith.mulf %264, %267 : vector<8x32xf32>
    %269 = arith.addf %266, %268 : vector<8x32xf32>
    %270 = math.tanh %269 : vector<8x32xf32>
    %cst_47 = arith.constant 1.000000e+00 : f32
    %271 = vector.broadcast %cst_47 : f32 to vector<8x32xf32>
    %272 = arith.subf %271, %265 : vector<8x32xf32>
    %273 = arith.mulf %272, %270 : vector<8x32xf32>
    %274 = arith.mulf %265, %227 : vector<8x32xf32>
    %275 = arith.addf %273, %274 : vector<8x32xf32>
    %276 = vector.extract_strided_slice %5 {offsets = [16, 128], sizes = [8, 128], strides = [1, 1]} : vector<64x256xf32> to vector<8x128xf32>
    %cst_48 = arith.constant dense<0.000000e+00> : vector<8x128xf32>
    %277 = tpu.matmul %251, %8, %cst_48 {dimension_numbers = #tpu.dot_dimension_numbers<[1], [0], [0], [1], [0, 0, 1, 1], [], []>} : vector<8x32xf32>, vector<32x128xf32>, vector<8x128xf32> -> vector<8x128xf32>
    %278 = vector.broadcast %9 : vector<1x128xf32> to vector<8x128xf32>
    %279 = arith.addf %277, %278 : vector<8x128xf32>
    %280 = vector.extract_strided_slice %276 {offsets = [0, 0], sizes = [8, 64], strides = [1, 1]} : vector<8x128xf32> to vector<8x64xf32>
    %281 = vector.extract_strided_slice %279 {offsets = [0, 0], sizes = [8, 64], strides = [1, 1]} : vector<8x128xf32> to vector<8x64xf32>
    %282 = arith.addf %280, %281 : vector<8x64xf32>
    %283 = arith.negf %282 : vector<8x64xf32>
    %284 = math.exp %283 : vector<8x64xf32>
    %cst_49 = arith.constant 1.000000e+00 : f32
    %285 = vector.broadcast %cst_49 : f32 to vector<8x64xf32>
    %286 = arith.addf %285, %284 : vector<8x64xf32>
    %287 = arith.divf %285, %286 : vector<8x64xf32>
    %288 = vector.extract_strided_slice %287 {offsets = [0, 0], sizes = [8, 32], strides = [1, 1]} : vector<8x64xf32> to vector<8x32xf32>
    %289 = vector.extract_strided_slice %287 {offsets = [0, 32], sizes = [8, 32], strides = [1, 1]} : vector<8x64xf32> to vector<8x32xf32>
    %290 = vector.extract_strided_slice %276 {offsets = [0, 64], sizes = [8, 32], strides = [1, 1]} : vector<8x128xf32> to vector<8x32xf32>
    %291 = vector.extract_strided_slice %279 {offsets = [0, 64], sizes = [8, 32], strides = [1, 1]} : vector<8x128xf32> to vector<8x32xf32>
    %292 = arith.mulf %288, %291 : vector<8x32xf32>
    %293 = arith.addf %290, %292 : vector<8x32xf32>
    %294 = math.tanh %293 : vector<8x32xf32>
    %cst_50 = arith.constant 1.000000e+00 : f32
    %295 = vector.broadcast %cst_50 : f32 to vector<8x32xf32>
    %296 = arith.subf %295, %289 : vector<8x32xf32>
    %297 = arith.mulf %296, %294 : vector<8x32xf32>
    %298 = arith.mulf %289, %251 : vector<8x32xf32>
    %299 = arith.addf %297, %298 : vector<8x32xf32>
    %300 = vector.extract_strided_slice %5 {offsets = [48, 0], sizes = [8, 128], strides = [1, 1]} : vector<64x256xf32> to vector<8x128xf32>
    %cst_51 = arith.constant dense<0.000000e+00> : vector<8x128xf32>
    %301 = tpu.matmul %275, %6, %cst_51 {dimension_numbers = #tpu.dot_dimension_numbers<[1], [0], [0], [1], [0, 0, 1, 1], [], []>} : vector<8x32xf32>, vector<32x128xf32>, vector<8x128xf32> -> vector<8x128xf32>
    %302 = vector.broadcast %7 : vector<1x128xf32> to vector<8x128xf32>
    %303 = arith.addf %301, %302 : vector<8x128xf32>
    %304 = vector.extract_strided_slice %300 {offsets = [0, 0], sizes = [8, 64], strides = [1, 1]} : vector<8x128xf32> to vector<8x64xf32>
    %305 = vector.extract_strided_slice %303 {offsets = [0, 0], sizes = [8, 64], strides = [1, 1]} : vector<8x128xf32> to vector<8x64xf32>
    %306 = arith.addf %304, %305 : vector<8x64xf32>
    %307 = arith.negf %306 : vector<8x64xf32>
    %308 = math.exp %307 : vector<8x64xf32>
    %cst_52 = arith.constant 1.000000e+00 : f32
    %309 = vector.broadcast %cst_52 : f32 to vector<8x64xf32>
    %310 = arith.addf %309, %308 : vector<8x64xf32>
    %311 = arith.divf %309, %310 : vector<8x64xf32>
    %312 = vector.extract_strided_slice %311 {offsets = [0, 0], sizes = [8, 32], strides = [1, 1]} : vector<8x64xf32> to vector<8x32xf32>
    %313 = vector.extract_strided_slice %311 {offsets = [0, 32], sizes = [8, 32], strides = [1, 1]} : vector<8x64xf32> to vector<8x32xf32>
    %314 = vector.extract_strided_slice %300 {offsets = [0, 64], sizes = [8, 32], strides = [1, 1]} : vector<8x128xf32> to vector<8x32xf32>
    %315 = vector.extract_strided_slice %303 {offsets = [0, 64], sizes = [8, 32], strides = [1, 1]} : vector<8x128xf32> to vector<8x32xf32>
    %316 = arith.mulf %312, %315 : vector<8x32xf32>
    %317 = arith.addf %314, %316 : vector<8x32xf32>
    %318 = math.tanh %317 : vector<8x32xf32>
    %cst_53 = arith.constant 1.000000e+00 : f32
    %319 = vector.broadcast %cst_53 : f32 to vector<8x32xf32>
    %320 = arith.subf %319, %313 : vector<8x32xf32>
    %321 = arith.mulf %320, %318 : vector<8x32xf32>
    %322 = arith.mulf %313, %275 : vector<8x32xf32>
    %323 = arith.addf %321, %322 : vector<8x32xf32>
    %324 = vector.extract_strided_slice %5 {offsets = [8, 128], sizes = [8, 128], strides = [1, 1]} : vector<64x256xf32> to vector<8x128xf32>
    %cst_54 = arith.constant dense<0.000000e+00> : vector<8x128xf32>
    %325 = tpu.matmul %299, %8, %cst_54 {dimension_numbers = #tpu.dot_dimension_numbers<[1], [0], [0], [1], [0, 0, 1, 1], [], []>} : vector<8x32xf32>, vector<32x128xf32>, vector<8x128xf32> -> vector<8x128xf32>
    %326 = vector.broadcast %9 : vector<1x128xf32> to vector<8x128xf32>
    %327 = arith.addf %325, %326 : vector<8x128xf32>
    %328 = vector.extract_strided_slice %324 {offsets = [0, 0], sizes = [8, 64], strides = [1, 1]} : vector<8x128xf32> to vector<8x64xf32>
    %329 = vector.extract_strided_slice %327 {offsets = [0, 0], sizes = [8, 64], strides = [1, 1]} : vector<8x128xf32> to vector<8x64xf32>
    %330 = arith.addf %328, %329 : vector<8x64xf32>
    %331 = arith.negf %330 : vector<8x64xf32>
    %332 = math.exp %331 : vector<8x64xf32>
    %cst_55 = arith.constant 1.000000e+00 : f32
    %333 = vector.broadcast %cst_55 : f32 to vector<8x64xf32>
    %334 = arith.addf %333, %332 : vector<8x64xf32>
    %335 = arith.divf %333, %334 : vector<8x64xf32>
    %336 = vector.extract_strided_slice %335 {offsets = [0, 0], sizes = [8, 32], strides = [1, 1]} : vector<8x64xf32> to vector<8x32xf32>
    %337 = vector.extract_strided_slice %335 {offsets = [0, 32], sizes = [8, 32], strides = [1, 1]} : vector<8x64xf32> to vector<8x32xf32>
    %338 = vector.extract_strided_slice %324 {offsets = [0, 64], sizes = [8, 32], strides = [1, 1]} : vector<8x128xf32> to vector<8x32xf32>
    %339 = vector.extract_strided_slice %327 {offsets = [0, 64], sizes = [8, 32], strides = [1, 1]} : vector<8x128xf32> to vector<8x32xf32>
    %340 = arith.mulf %336, %339 : vector<8x32xf32>
    %341 = arith.addf %338, %340 : vector<8x32xf32>
    %342 = math.tanh %341 : vector<8x32xf32>
    %cst_56 = arith.constant 1.000000e+00 : f32
    %343 = vector.broadcast %cst_56 : f32 to vector<8x32xf32>
    %344 = arith.subf %343, %337 : vector<8x32xf32>
    %345 = arith.mulf %344, %342 : vector<8x32xf32>
    %346 = arith.mulf %337, %299 : vector<8x32xf32>
    %347 = arith.addf %345, %346 : vector<8x32xf32>
    %348 = vector.extract_strided_slice %5 {offsets = [56, 0], sizes = [8, 128], strides = [1, 1]} : vector<64x256xf32> to vector<8x128xf32>
    %cst_57 = arith.constant dense<0.000000e+00> : vector<8x128xf32>
    %349 = tpu.matmul %323, %6, %cst_57 {dimension_numbers = #tpu.dot_dimension_numbers<[1], [0], [0], [1], [0, 0, 1, 1], [], []>} : vector<8x32xf32>, vector<32x128xf32>, vector<8x128xf32> -> vector<8x128xf32>
    %350 = vector.broadcast %7 : vector<1x128xf32> to vector<8x128xf32>
    %351 = arith.addf %349, %350 : vector<8x128xf32>
    %352 = vector.extract_strided_slice %348 {offsets = [0, 0], sizes = [8, 64], strides = [1, 1]} : vector<8x128xf32> to vector<8x64xf32>
    %353 = vector.extract_strided_slice %351 {offsets = [0, 0], sizes = [8, 64], strides = [1, 1]} : vector<8x128xf32> to vector<8x64xf32>
    %354 = arith.addf %352, %353 : vector<8x64xf32>
    %355 = arith.negf %354 : vector<8x64xf32>
    %356 = math.exp %355 : vector<8x64xf32>
    %cst_58 = arith.constant 1.000000e+00 : f32
    %357 = vector.broadcast %cst_58 : f32 to vector<8x64xf32>
    %358 = arith.addf %357, %356 : vector<8x64xf32>
    %359 = arith.divf %357, %358 : vector<8x64xf32>
    %360 = vector.extract_strided_slice %359 {offsets = [0, 0], sizes = [8, 32], strides = [1, 1]} : vector<8x64xf32> to vector<8x32xf32>
    %361 = vector.extract_strided_slice %359 {offsets = [0, 32], sizes = [8, 32], strides = [1, 1]} : vector<8x64xf32> to vector<8x32xf32>
    %362 = vector.extract_strided_slice %348 {offsets = [0, 64], sizes = [8, 32], strides = [1, 1]} : vector<8x128xf32> to vector<8x32xf32>
    %363 = vector.extract_strided_slice %351 {offsets = [0, 64], sizes = [8, 32], strides = [1, 1]} : vector<8x128xf32> to vector<8x32xf32>
    %364 = arith.mulf %360, %363 : vector<8x32xf32>
    %365 = arith.addf %362, %364 : vector<8x32xf32>
    %366 = math.tanh %365 : vector<8x32xf32>
    %cst_59 = arith.constant 1.000000e+00 : f32
    %367 = vector.broadcast %cst_59 : f32 to vector<8x32xf32>
    %368 = arith.subf %367, %361 : vector<8x32xf32>
    %369 = arith.mulf %368, %366 : vector<8x32xf32>
    %370 = arith.mulf %361, %323 : vector<8x32xf32>
    %371 = arith.addf %369, %370 : vector<8x32xf32>
    %372 = vector.extract_strided_slice %5 {offsets = [0, 128], sizes = [8, 128], strides = [1, 1]} : vector<64x256xf32> to vector<8x128xf32>
    %cst_60 = arith.constant dense<0.000000e+00> : vector<8x128xf32>
    %373 = tpu.matmul %347, %8, %cst_60 {dimension_numbers = #tpu.dot_dimension_numbers<[1], [0], [0], [1], [0, 0, 1, 1], [], []>} : vector<8x32xf32>, vector<32x128xf32>, vector<8x128xf32> -> vector<8x128xf32>
    %374 = vector.broadcast %9 : vector<1x128xf32> to vector<8x128xf32>
    %375 = arith.addf %373, %374 : vector<8x128xf32>
    %376 = vector.extract_strided_slice %372 {offsets = [0, 0], sizes = [8, 64], strides = [1, 1]} : vector<8x128xf32> to vector<8x64xf32>
    %377 = vector.extract_strided_slice %375 {offsets = [0, 0], sizes = [8, 64], strides = [1, 1]} : vector<8x128xf32> to vector<8x64xf32>
    %378 = arith.addf %376, %377 : vector<8x64xf32>
    %379 = arith.negf %378 : vector<8x64xf32>
    %380 = math.exp %379 : vector<8x64xf32>
    %cst_61 = arith.constant 1.000000e+00 : f32
    %381 = vector.broadcast %cst_61 : f32 to vector<8x64xf32>
    %382 = arith.addf %381, %380 : vector<8x64xf32>
    %383 = arith.divf %381, %382 : vector<8x64xf32>
    %384 = vector.extract_strided_slice %383 {offsets = [0, 0], sizes = [8, 32], strides = [1, 1]} : vector<8x64xf32> to vector<8x32xf32>
    %385 = vector.extract_strided_slice %383 {offsets = [0, 32], sizes = [8, 32], strides = [1, 1]} : vector<8x64xf32> to vector<8x32xf32>
    %386 = vector.extract_strided_slice %372 {offsets = [0, 64], sizes = [8, 32], strides = [1, 1]} : vector<8x128xf32> to vector<8x32xf32>
    %387 = vector.extract_strided_slice %375 {offsets = [0, 64], sizes = [8, 32], strides = [1, 1]} : vector<8x128xf32> to vector<8x32xf32>
    %388 = arith.mulf %384, %387 : vector<8x32xf32>
    %389 = arith.addf %386, %388 : vector<8x32xf32>
    %390 = math.tanh %389 : vector<8x32xf32>
    %cst_62 = arith.constant 1.000000e+00 : f32
    %391 = vector.broadcast %cst_62 : f32 to vector<8x32xf32>
    %392 = arith.subf %391, %385 : vector<8x32xf32>
    %393 = arith.mulf %392, %390 : vector<8x32xf32>
    %394 = arith.mulf %385, %347 : vector<8x32xf32>
    %395 = arith.addf %393, %394 : vector<8x32xf32>
    %396 = tpu.concatenate %35, %83, %131, %179, %227, %275, %323, %371 in 0 : vector<8x32xf32>, vector<8x32xf32>, vector<8x32xf32>, vector<8x32xf32>, vector<8x32xf32>, vector<8x32xf32>, vector<8x32xf32>, vector<8x32xf32> -> vector<64x32xf32>
    %397 = tpu.concatenate %395, %347, %299, %251, %203, %155, %107, %59 in 0 : vector<8x32xf32>, vector<8x32xf32>, vector<8x32xf32>, vector<8x32xf32>, vector<8x32xf32>, vector<8x32xf32>, vector<8x32xf32>, vector<8x32xf32> -> vector<64x32xf32>
    %c0_63 = arith.constant 0 : index
    %c0_64 = arith.constant 0 : index
    %398 = vector.load %arg7[%c0_63, %c0_64] : memref<32x128xf32, #tpu.memory_space<vmem>>, vector<32x128xf32>
    %cst_65 = arith.constant dense<0.000000e+00> : vector<64x128xf32>
    %399 = tpu.matmul %396, %398, %cst_65 {dimension_numbers = #tpu.dot_dimension_numbers<[1], [0], [0], [1], [0, 0, 1, 1], [], []>} : vector<64x32xf32>, vector<32x128xf32>, vector<64x128xf32> -> vector<64x128xf32>
    %c0_66 = arith.constant 0 : index
    %c0_67 = arith.constant 0 : index
    %400 = vector.load %arg8[%c0_66, %c0_67] : memref<32x128xf32, #tpu.memory_space<vmem>>, vector<32x128xf32>
    %cst_68 = arith.constant dense<0.000000e+00> : vector<64x128xf32>
    %401 = tpu.matmul %397, %400, %cst_68 {dimension_numbers = #tpu.dot_dimension_numbers<[1], [0], [0], [1], [0, 0, 1, 1], [], []>} : vector<64x32xf32>, vector<32x128xf32>, vector<64x128xf32> -> vector<64x128xf32>
    %402 = arith.addf %399, %401 : vector<64x128xf32>
    %c0_69 = arith.constant 0 : index
    %c0_70 = arith.constant 0 : index
    %403 = vector.load %arg9[%c0_69, %c0_70] : memref<1x128xf32, #tpu.memory_space<vmem>>, vector<1x128xf32>
    %404 = vector.broadcast %403 : vector<1x128xf32> to vector<64x128xf32>
    %405 = arith.addf %402, %404 : vector<64x128xf32>
    %c0_71 = arith.constant 0 : index
    %c0_72 = arith.constant 0 : index
    %406 = vector.load %arg10[%c0_71, %c0_72] : memref<64x128xf32, #tpu.memory_space<vmem>>, vector<64x128xf32>
    tpu.vector_store %arg10[%c0_71, %c0_72], %405 {strides = array<i32>} : memref<64x128xf32, #tpu.memory_space<vmem>>, vector<64x128xf32>,
    return
  }
}

</mosaic_0001>

<llo_original>
// kernel: tpu_custom_call.1
$region0: #{tpu_custom_call.1}
  #allocation0 [shape = 'u32[]', space=smem, size = 0x4, offset = 0x4, fixed_abs, tag = 'smem constant byte address 0x4 - core index']
  #allocation1 [shape = 'u32[144,128]{1,0:T(1,128)}', space=vmem, size = 0x12000, scoped, tag = 'internal scratch']
  %s0 = inlined_call_operand.vmem [shape: f32[64,32], index: 0, kind: input, shape index: {}]
  %s1 = inlined_call_operand.vmem [shape: f32[32,256], index: 1, kind: input, shape index: {}]
  %s2 = inlined_call_operand.vmem [shape: f32[1,256], index: 2, kind: input, shape index: {}]
  %s3 = inlined_call_operand.vmem [shape: f32[32,128], index: 3, kind: input, shape index: {}]
  %s4 = inlined_call_operand.vmem [shape: f32[1,128], index: 4, kind: input, shape index: {}]
  %s5 = inlined_call_operand.hbm [shape: f32[32,128], index: 5, kind: input, shape index: {}]
  %s6 = inlined_call_operand.vmem [shape: f32[1,128], index: 6, kind: input, shape index: {}]
  %s7 = inlined_call_operand.hbm [shape: f32[32,128], index: 7, kind: input, shape index: {}]
  %s8 = inlined_call_operand.hbm [shape: f32[32,128], index: 8, kind: input, shape index: {}]
  %s9 = inlined_call_operand.vmem [shape: f32[1,128], index: 9, kind: input, shape index: {}]
  %s10 = inlined_call_operand.hbm [shape: f32[64,128], index: 10, kind: output, shape index: {}]
  %s11 = sld [smem:[#allocation0]]
  $region62: #{tpu_custom_call.1} parent=0
    _
  %s13 = ssub.s32 1, %s11
  %s14 = scalar_select 0, %s13, %s11
  $region1: #{tpu_custom_call.1} parent=0
    #allocation2 [shape = 'u8[16384]{0}', space=vmem, size = 0x4000, scoped, tag = 'input window, operand 5, single buffered']
    #allocation3 [shape = 's32[1]{0}', space=sflag, size = 0x4, scoped, tag = 'scoped memory for tpu_custom_call.1']
    #allocation4 [shape = 's32[1]{0}', space=sflag, size = 0x4, scoped, tag = 'scoped memory for tpu_custom_call.1']
    #allocation5 [shape = 'u8[16384]{0}', space=vmem, size = 0x4000, scoped, tag = 'input window, operand 7, single buffered']
    #allocation6 [shape = 's32[1]{0}', space=sflag, size = 0x4, scoped, tag = 'scoped memory for tpu_custom_call.1']
    #allocation7 [shape = 'u8[16384]{0}', space=vmem, size = 0x4000, scoped, tag = 'input window, operand 8, single buffered']
    #allocation8 [shape = 'u8[32768]{0}', space=vmem, size = 0x8000, scoped, tag = 'output window, operand 0, single buffered']
    %15 = vsyncpa [#allocation3], 0
    %16 = vsyncpa [#allocation6], 0
    %17 = vsyncpa [#allocation4], 0
    // Predicated region
    $region2: #{tpu_custom_call.1} parent=1 // pred_check
      _
    $region3: #{tpu_custom_call.1} parent=1 // pred_check_branch
      %19 = sbr.rel (0) target = $region5
    $region4: #{tpu_custom_call.1} parent=1 // pred_region
      _
    $region5: #{tpu_custom_call.1} parent=1 // pred_fallthru
      _
    // Predicated region
    $region6: #{tpu_custom_call.1} parent=1 // pred_check
      _
    $region7: #{tpu_custom_call.1} parent=1 // pred_check_branch
      %21 = sbr.rel (0) target = $region9
    $region8: #{tpu_custom_call.1} parent=1 // pred_region
      _
    $region9: #{tpu_custom_call.1} parent=1 // pred_fallthru
      _
    // Predicated region
    $region10: #{tpu_custom_call.1} parent=1 // pred_check
      _
    $region11: #{tpu_custom_call.1} parent=1 // pred_check_branch
      %23 = sbr.rel (0) target = $region13
    $region12: #{tpu_custom_call.1} parent=1 // pred_region
      _
    $region13: #{tpu_custom_call.1} parent=1 // pred_fallthru
      _
    // Predicated region
    $region14: #{tpu_custom_call.1} parent=1 // pred_check
      _
    $region15: #{tpu_custom_call.1} parent=1 // pred_check_branch
      %25 = sbr.rel (0) target = $region17
    $region16: #{tpu_custom_call.1} parent=1 // pred_region
      _
    $region17: #{tpu_custom_call.1} parent=1 // pred_fallthru
      _
    // Predicated region
    $region18: #{tpu_custom_call.1} parent=1 // pred_check
      _
    $region19: #{tpu_custom_call.1} parent=1 // pred_check_branch
      %27 = sbr.rel (0) target = $region21
    $region20: #{tpu_custom_call.1} parent=1 // pred_region
      _
    $region21: #{tpu_custom_call.1} parent=1 // pred_fallthru
      _
    // Predicated region
    $region22: #{tpu_custom_call.1} parent=1 // pred_check
      _
    $region23: #{tpu_custom_call.1} parent=1 // pred_check_branch
      %29 = sbr.rel (0) target = $region25
    $region24: #{tpu_custom_call.1} parent=1 // pred_region
      %s31 = ssub.s32 512, 512
      %32 = vsyncadd [#allocation3], %s31
      %s33 = sshll.u32 [#allocation2], 4
      %s34 = int_to_ptr.vmem [resolvable:$true] %s33
      %39 = dma.hbm_to_vmem [thread:$0]  %s5, 512, %s34, [#allocation3], 128, 128, 8
    $region25: #{tpu_custom_call.1} parent=1 // pred_fallthru
      _
    // Predicated region
    $region26: #{tpu_custom_call.1} parent=1 // pred_check
      _
    $region27: #{tpu_custom_call.1} parent=1 // pred_check_branch
      %41 = sbr.rel (0) target = $region29
    $region28: #{tpu_custom_call.1} parent=1 // pred_region
      _
    $region29: #{tpu_custom_call.1} parent=1 // pred_fallthru
      _
    // Predicated region
    $region30: #{tpu_custom_call.1} parent=1 // pred_check
      _
    $region31: #{tpu_custom_call.1} parent=1 // pred_check_branch
      %43 = sbr.rel (0) target = $region33
    $region32: #{tpu_custom_call.1} parent=1 // pred_region
      %s45 = ssub.s32 512, 512
      %46 = vsyncadd [#allocation6], %s45
      %s47 = sshll.u32 [#allocation5], 4
      %s48 = int_to_ptr.vmem [resolvable:$true] %s47
      %53 = dma.hbm_to_vmem [thread:$0]  %s7, 512, %s48, [#allocation6], 128, 128, 8
    $region33: #{tpu_custom_call.1} parent=1 // pred_fallthru
      _
    // Predicated region
    $region34: #{tpu_custom_call.1} parent=1 // pred_check
      _
    $region35: #{tpu_custom_call.1} parent=1 // pred_check_branch
      %55 = sbr.rel (0) target = $region37
    $region36: #{tpu_custom_call.1} parent=1 // pred_region
      %s57 = ssub.s32 512, 512
      %58 = vsyncadd [#allocation6], %s57
      %s59 = sshll.u32 [#allocation7], 4
      %s60 = int_to_ptr.vmem [resolvable:$true] %s59
      %65 = dma.hbm_to_vmem [thread:$0]  %s8, 512, %s60, [#allocation6], 128, 128, 8
    $region37: #{tpu_custom_call.1} parent=1 // pred_fallthru
      _
    // Predicated region
    $region38: #{tpu_custom_call.1} parent=1 // pred_check
      _
    $region39: #{tpu_custom_call.1} parent=1 // pred_check_branch
      %67 = sbr.rel (0) target = $region41
    $region40: #{tpu_custom_call.1} parent=1 // pred_region
      _
    $region41: #{tpu_custom_call.1} parent=1 // pred_fallthru
      _
    // Predicated region
    $region42: #{tpu_custom_call.1} parent=1 // pred_check
      _
    $region43: #{tpu_custom_call.1} parent=1 // pred_check_branch
      %69 = sbr.rel (0) target = $region45
    $region44: #{tpu_custom_call.1} parent=1 // pred_region
      %70 = dma.done [#allocation3], 512
    $region45: #{tpu_custom_call.1} parent=1 // pred_fallthru
      _
    // Predicated region
    $region46: #{tpu_custom_call.1} parent=1 // pred_check
      _
    $region47: #{tpu_custom_call.1} parent=1 // pred_check_branch
      %72 = sbr.rel (0) target = $region49
    $region48: #{tpu_custom_call.1} parent=1 // pred_region
      %73 = dma.done [#allocation6], 512
    $region49: #{tpu_custom_call.1} parent=1 // pred_fallthru
      _
    // Predicated region
    $region50: #{tpu_custom_call.1} parent=1 // pred_check
      _
    $region51: #{tpu_custom_call.1} parent=1 // pred_check_branch
      %75 = sbr.rel (0) target = $region53
    $region52: #{tpu_custom_call.1} parent=1 // pred_region
      %76 = dma.done [#allocation6], 512
    $region53: #{tpu_custom_call.1} parent=1 // pred_fallthru
      _
    %v77 = vld [vmem:[%s0] sm:$0xff]
    %v78 = vld [vmem:[%s0 + $0x8] sm:$0xff]
    %v79 = vld [vmem:[%s0 + $0x10] sm:$0xff]
    %v80 = vld [vmem:[%s0 + $0x18] sm:$0xff]
    %v81 = vld [vmem:[%s0 + $0x20] sm:$0xff]
    %v82 = vld [vmem:[%s0 + $0x28] sm:$0xff]
    %v83 = vld [vmem:[%s0 + $0x30] sm:$0xff]
    %v84 = vld [vmem:[%s0 + $0x38] sm:$0xff]
    %v85 = vld [vmem:[%s1] sm:$0xff]
    %v86 = vld [vmem:[%s1 + $0x8] sm:$0xff]
    %v87 = vld [vmem:[%s1 + $0x10] sm:$0xff]
    %v88 = vld [vmem:[%s1 + $0x18] sm:$0xff]
    %v89 = vld [vmem:[%s1 + $0x20] sm:$0xff]
    %v90 = vld [vmem:[%s1 + $0x28] sm:$0xff]
    %v91 = vld [vmem:[%s1 + $0x30] sm:$0xff]
    %v92 = vld [vmem:[%s1 + $0x38] sm:$0xff]
    %v93 = vld [vmem:[%s2] sm:$0x3]
    %v95 = vlaneseq
    %v96 = vshrl.u32 %v95, 7
    %v97 = vsub.s32 0, %v96
    %v98 = vrot.slane %v93, %v97
    %v99 = vlaneseq
    %v100 = vshrl.u32 %v99, 7
    %v101 = vsub.s32 1, %v100
    %v102 = vrot.slane %v93, %v101
    %vm105 = vcmask 261120
    %v107 = vsel %vm105, %v77, 0
    %v110 = vsel %vm105, %v78, 0
    %v113 = vsel %vm105, %v79, 0
    %v116 = vsel %vm105, %v80, 0
    %v119 = vsel %vm105, %v81, 0
    %v122 = vsel %vm105, %v82, 0
    %v125 = vsel %vm105, %v83, 0
    %v128 = vsel %vm105, %v84, 0
    %130 = vmatprep.subr.mxu0 %v86
    %131 = vmatpush1.msra.mxu0 %v85
    %132 = vmatprep.subr.mxu0 %v88
    %133 = vmatpush1.msra.mxu0 %v87
    %134 = vmatprep.subr.mxu0 %v90
    %135 = vmatpush1.msra.mxu0 %v89
    %136 = vmatprep.subr.mxu0 %v92
    %137 = vmatpush1.msra.mxu0 %v91
    %138 = vmatprep.subr.mxu0 0.0
    %139 = vmatpush1.msra.mxu0 0.0
    %140 = vmatprep.subr.mxu0 0.0
    %141 = vmatpush1.msra.mxu0 0.0
    %142 = vmatprep.subr.mxu0 0.0
    %143 = vmatpush1.msra.mxu0 0.0
    %144 = vmatprep.subr.mxu0 0.0
    %145 = vmatpush1.msra.mxu0 0.0
    %146 = vmatprep.subr.mxu0 0.0
    %147 = vmatpush1.msra.mxu0 0.0
    %148 = vmatprep.subr.mxu0 0.0
    %149 = vmatpush1.msra.mxu0 0.0
    %150 = vmatprep.subr.mxu0 0.0
    %151 = vmatpush1.msra.mxu0 0.0
    %152 = vmatprep.subr.mxu0 0.0
    %153 = vmatpush1.msra.mxu0 0.0
    %154 = vmatprep.subr.mxu0 0.0
    %155 = vmatpush1.msra.mxu0 0.0
    %156 = vmatprep.subr.mxu0 0.0
    %157 = vmatpush1.msra.mxu0 0.0
    %158 = vmatprep.subr.mxu0 0.0
    %159 = vmatpush1.msra.mxu0 0.0
    %160 = vmatprep.subr.mxu0 0.0
    %161 = vmatpush1.msra.mxu0 0.0
    %162 = vmatprep.subr.mxu0 0.0
    %163 = vmatpush1.msra.mxu0 0.0
    %164 = vmatprep.subr.mxu0 0.0
    %165 = vmatpush1.msra.mxu0 0.0
    %166 = vmatprep.subr.mxu0 0.0
    %167 = vmatpush1.msra.mxu0 0.0
    %168 = vmatprep.subr.mxu0 0.0
    %169 = vmatpush1.msra.mxu0 0.0
    %170 = vmatprep.subr.mxu0 0.0
    %171 = vmatpush1.msra.mxu0 0.0
    %172 = vmatprep.subr.mxu0 0.0
    %173 = vmatpush1.msra.mxu0 0.0
    %174 = vmatprep.subr.mxu0 0.0
    %175 = vmatpush1.msra.mxu0 0.0
    %176 = vmatprep.subr.mxu0 0.0
    %177 = vmatpush1.msra.mxu0 0.0
    %178 = vmatprep.subr.mxu0 0.0
    %179 = vmatpush1.msra.mxu0 0.0
    %180 = vmatprep.subr.mxu0 0.0
    %181 = vmatpush1.msra.mxu0 0.0
    %182 = vmatprep.subr.mxu0 0.0
    %183 = vmatpush1.msra.mxu0 0.0
    %184 = vmatprep.subr.mxu0 0.0
    %185 = vmatpush1.msra.mxu0 0.0
    %186 = vmatprep.subr.mxu0 0.0
    %187 = vmatpush1.msra.mxu0 0.0
    %188 = vmatprep.subr.mxu0 0.0
    %189 = vmatpush1.msra.mxu0 0.0
    %190 = vmatprep.subr.mxu0 0.0
    %191 = vmatpush1.msra.mxu0 0.0
    %192 = vmatprep.subr.mxu0 0.0
    %193 = vmatpush1.msra.mxu0 0.0
    %194 = vmatprep.mubr.f32.mxu0 0.0
    %195 = vmatmul.mubr.f32.gmra.mrb[0].mxu0 %v107
    %v196 = vpop.f32.mrb[0].mxu0
    %v197 = vadd.f32 %v98, %v196
    %v198 = vpop.f32.mrb[0].mxu0
    %v199 = vadd.f32 %v102, %v198
    %200 = vmatprep.mubr.f32.mxu0 0.0
    %201 = vmatmul.mubr.f32.gmra.mrb[0].mxu0 %v110
    %v202 = vpop.f32.mrb[0].mxu0
    %v203 = vadd.f32 %v98, %v202
    %v204 = vpop.f32.mrb[0].mxu0
    %v205 = vadd.f32 %v102, %v204
    %206 = vmatprep.mubr.f32.mxu0 0.0
    %207 = vmatmul.mubr.f32.gmra.mrb[0].mxu0 %v113
    %v208 = vpop.f32.mrb[0].mxu0
    %v209 = vadd.f32 %v98, %v208
    %v210 = vpop.f32.mrb[0].mxu0
    %v211 = vadd.f32 %v102, %v210
    %212 = vmatprep.mubr.f32.mxu0 0.0
    %213 = vmatmul.mubr.f32.gmra.mrb[0].mxu0 %v116
    %v214 = vpop.f32.mrb[0].mxu0
    %v215 = vadd.f32 %v98, %v214
    %v216 = vpop.f32.mrb[0].mxu0
    %v217 = vadd.f32 %v102, %v216
    %218 = vmatprep.mubr.f32.mxu0 0.0
    %219 = vmatmul.mubr.f32.gmra.mrb[0].mxu0 %v119
    %v220 = vpop.f32.mrb[0].mxu0
    %v221 = vadd.f32 %v98, %v220
    %v222 = vpop.f32.mrb[0].mxu0
    %v223 = vadd.f32 %v102, %v222
    %224 = vmatprep.mubr.f32.mxu0 0.0
    %225 = vmatmul.mubr.f32.gmra.mrb[0].mxu0 %v122
    %v226 = vpop.f32.mrb[0].mxu0
    %v227 = vadd.f32 %v98, %v226
    %v228 = vpop.f32.mrb[0].mxu0
    %v229 = vadd.f32 %v102, %v228
    %230 = vmatprep.mubr.f32.mxu0 0.0
    %231 = vmatmul.mubr.f32.gmra.mrb[0].mxu0 %v125
    %v232 = vpop.f32.mrb[0].mxu0
    %v233 = vadd.f32 %v98, %v232
    %v234 = vpop.f32.mrb[0].mxu0
    %v235 = vadd.f32 %v102, %v234
    %236 = vmatprep.mubr.f32.mxu0 0.0
    %237 = vmatmul.mubr.f32.gmra.mrb[0].mxu0 %v128
    %v238 = vpop.f32.mrb[0].mxu0
    %v239 = vadd.f32 %v98, %v238
    %v240 = vpop.f32.mrb[0].mxu0
    %v241 = vadd.f32 %v102, %v240
    %242 = vdwg.mxu0
    %v243 = vld [vmem:[%s3] sm:$0xff]
    %v244 = vld [vmem:[%s3 + $0x8] sm:$0xff]
    %v245 = vld [vmem:[%s3 + $0x10] sm:$0xff]
    %v246 = vld [vmem:[%s3 + $0x18] sm:$0xff]
    %v247 = vld [vmem:[%s4] sm:$0x1]
    %v248 = vld [vmem:[#allocation2] sm:$0xff]
    %v249 = vld [vmem:[#allocation2 + $0x8] sm:$0xff]
    %v250 = vld [vmem:[#allocation2 + $0x10] sm:$0xff]
    %v251 = vld [vmem:[#allocation2 + $0x18] sm:$0xff]
    %v252 = vld [vmem:[%s6] sm:$0x1]
    %v254 = vlaneseq
    %v255 = vshrl.u32 %v254, 7
    %v256 = vsub.s32 0, %v255
    %v257 = vrot.slane %v247, %v256
    %v260 = vsel %vm105, 0.0, 0
    %262 = vmatprep.subr.mxu0 0.0
    %263 = vmatpush1.msra.mxu0 %v243
    %264 = vmatprep.subr.mxu0 0.0
    %265 = vmatpush1.msra.mxu0 %v244
    %266 = vmatprep.subr.mxu0 0.0
    %267 = vmatpush1.msra.mxu0 %v245
    %268 = vmatprep.subr.mxu0 0.0
    %269 = vmatpush1.msra.mxu0 %v246
    %270 = vmatprep.subr.mxu0 0.0
    %271 = vmatpush1.msra.mxu0 0.0
    %272 = vmatprep.subr.mxu0 0.0
    %273 = vmatpush1.msra.mxu0 0.0
    %274 = vmatprep.subr.mxu0 0.0
    %275 = vmatpush1.msra.mxu0 0.0
    %276 = vmatprep.subr.mxu0 0.0
    %277 = vmatpush1.msra.mxu0 0.0
    %278 = vmatprep.subr.mxu0 0.0
    %279 = vmatpush1.msra.mxu0 0.0
    %280 = vmatprep.subr.mxu0 0.0
    %281 = vmatpush1.msra.mxu0 0.0
    %282 = vmatprep.subr.mxu0 0.0
    %283 = vmatpush1.msra.mxu0 0.0
    %284 = vmatprep.subr.mxu0 0.0
    %285 = vmatpush1.msra.mxu0 0.0
    %286 = vmatprep.subr.mxu0 0.0
    %287 = vmatpush1.msra.mxu0 0.0
    %288 = vmatprep.subr.mxu0 0.0
    %289 = vmatpush1.msra.mxu0 0.0
    %290 = vmatprep.subr.mxu0 0.0
    %291 = vmatpush1.msra.mxu0 0.0
    %292 = vmatprep.subr.mxu0 0.0
    %293 = vmatpush1.msra.mxu0 0.0
    %294 = vmatprep.subr.mxu0 0.0
    %295 = vmatpush1.msra.mxu0 0.0
    %296 = vmatprep.subr.mxu0 0.0
    %297 = vmatpush1.msra.mxu0 0.0
    %298 = vmatprep.subr.mxu0 0.0
    %299 = vmatpush1.msra.mxu0 0.0
    %300 = vmatprep.subr.mxu0 0.0
    %301 = vmatpush1.msra.mxu0 0.0
    %302 = vmatprep.subr.mxu0 0.0
    %303 = vmatpush1.msra.mxu0 0.0
    %304 = vmatprep.subr.mxu0 0.0
    %305 = vmatpush1.msra.mxu0 0.0
    %306 = vmatprep.subr.mxu0 0.0
    %307 = vmatpush1.msra.mxu0 0.0
    %308 = vmatprep.subr.mxu0 0.0
    %309 = vmatpush1.msra.mxu0 0.0
    %310 = vmatprep.subr.mxu0 0.0
    %311 = vmatpush1.msra.mxu0 0.0
    %312 = vmatprep.subr.mxu0 0.0
    %313 = vmatpush1.msra.mxu0 0.0
    %314 = vmatprep.subr.mxu0 0.0
    %315 = vmatpush1.msra.mxu0 0.0
    %316 = vmatprep.subr.mxu0 0.0
    %317 = vmatpush1.msra.mxu0 0.0
    %318 = vmatprep.subr.mxu0 0.0
    %319 = vmatpush1.msra.mxu0 0.0
    %320 = vmatprep.subr.mxu0 0.0
    %321 = vmatpush1.msra.mxu0 0.0
    %322 = vmatprep.subr.mxu0 0.0
    %323 = vmatpush1.msra.mxu0 0.0
    %324 = vmatprep.subr.mxu0 0.0
    %325 = vmatpush1.msra.mxu0 0.0
    %326 = vmatprep.mubr.f32.mxu0 0.0
    %327 = vmatmul.mubr.f32.gmra.mrb[0].mxu0 %v260
    %v328 = vpop.f32.mrb[0].mxu0
    %v329 = vadd.f32 %v257, %v328
    %v330 = vpop.f32.mrb[0].mxu0
    %331 = vdwg.mxu0
    %v332 = vadd.f32 %v197, %v329
    %v333 = vxor.u32 %v332, 2147483648
    %v334 = vmul.f32 %v333, 1.442695
    %v335 = vpow.pop %v334
    %v336 = vadd.f32 %v335, 1.0
    %v337 = vrcp.pop %v336
    %v338 = vmul.f32 1.0, %v337
    %340 = vrot.lane.b32.xlu0 %v329, 64
    %v341 = vpop.permute.xlu0 %340
    %v343 = vmul.f32 %v338, %v341
    %345 = vrot.lane.b32.xlu0 %v343, 64
    %v346 = vpop.permute.xlu0 %345
    %v348 = vadd.f32 %v197, %v346
    %v349 = vtanh.pop %v348
    %v350 = vsub.f32 1.0, %v338
    %352 = vrot.lane.b32.xlu0 %v349, 96
    %v353 = vpop.permute.xlu0 %352
    %v355 = vmul.f32 %v350, %v353
    %v356 = vmul.f32 %v338, 0.0
    %v357 = vadd.f32 %v355, %v356
    %v359 = vlaneseq
    %v360 = vshrl.u32 %v359, 7
    %v361 = vsub.s32 0, %v360
    %v362 = vrot.slane %v252, %v361
    %364 = vmatprep.subr.mxu0 0.0
    %365 = vmatpush1.msra.mxu0 %v248
    %366 = vmatprep.subr.mxu0 0.0
    %367 = vmatpush1.msra.mxu0 %v249
    %368 = vmatprep.subr.mxu0 0.0
    %369 = vmatpush1.msra.mxu0 %v250
    %370 = vmatprep.subr.mxu0 0.0
    %371 = vmatpush1.msra.mxu0 %v251
    %372 = vmatprep.subr.mxu0 0.0
    %373 = vmatpush1.msra.mxu0 0.0
    %374 = vmatprep.subr.mxu0 0.0
    %375 = vmatpush1.msra.mxu0 0.0
    %376 = vmatprep.subr.mxu0 0.0
    %377 = vmatpush1.msra.mxu0 0.0
    %378 = vmatprep.subr.mxu0 0.0
    %379 = vmatpush1.msra.mxu0 0.0
    %380 = vmatprep.subr.mxu0 0.0
    %381 = vmatpush1.msra.mxu0 0.0
    %382 = vmatprep.subr.mxu0 0.0
    %383 = vmatpush1.msra.mxu0 0.0
    %384 = vmatprep.subr.mxu0 0.0
    %385 = vmatpush1.msra.mxu0 0.0
    %386 = vmatprep.subr.mxu0 0.0
    %387 = vmatpush1.msra.mxu0 0.0
    %388 = vmatprep.subr.mxu0 0.0
    %389 = vmatpush1.msra.mxu0 0.0
    %390 = vmatprep.subr.mxu0 0.0
    %391 = vmatpush1.msra.mxu0 0.0
    %392 = vmatprep.subr.mxu0 0.0
    %393 = vmatpush1.msra.mxu0 0.0
    %394 = vmatprep.subr.mxu0 0.0
    %395 = vmatpush1.msra.mxu0 0.0
    %396 = vmatprep.subr.mxu0 0.0
    %397 = vmatpush1.msra.mxu0 0.0
    %398 = vmatprep.subr.mxu0 0.0
    %399 = vmatpush1.msra.mxu0 0.0
    %400 = vmatprep.subr.mxu0 0.0
    %401 = vmatpush1.msra.mxu0 0.0
    %402 = vmatprep.subr.mxu0 0.0
    %403 = vmatpush1.msra.mxu0 0.0
    %404 = vmatprep.subr.mxu0 0.0
    %405 = vmatpush1.msra.mxu0 0.0
    %406 = vmatprep.subr.mxu0 0.0
    %407 = vmatpush1.msra.mxu0 0.0
    %408 = vmatprep.subr.mxu0 0.0
    %409 = vmatpush1.msra.mxu0 0.0
    %410 = vmatprep.subr.mxu0 0.0
    %411 = vmatpush1.msra.mxu0 0.0
    %412 = vmatprep.subr.mxu0 0.0
    %413 = vmatpush1.msra.mxu0 0.0
    %414 = vmatprep.subr.mxu0 0.0
    %415 = vmatpush1.msra.mxu0 0.0
    %416 = vmatprep.subr.mxu0 0.0
    %417 = vmatpush1.msra.mxu0 0.0
    %418 = vmatprep.subr.mxu0 0.0
    %419 = vmatpush1.msra.mxu0 0.0
    %420 = vmatprep.subr.mxu0 0.0
    %421 = vmatpush1.msra.mxu0 0.0
    %422 = vmatprep.subr.mxu0 0.0
    %423 = vmatpush1.msra.mxu0 0.0
    %424 = vmatprep.subr.mxu0 0.0
    %425 = vmatpush1.msra.mxu0 0.0
    %426 = vmatprep.subr.mxu0 0.0
    %427 = vmatpush1.msra.mxu0 0.0
    %428 = vmatprep.mubr.f32.mxu0 0.0
    %429 = vmatmul.mubr.f32.gmra.mrb[0].mxu0 %v260
    %v430 = vpop.f32.mrb[0].mxu0
    %v431 = vadd.f32 %v362, %v430
    %v432 = vpop.f32.mrb[0].mxu0
    %433 = vdwg.mxu0
    %v434 = vadd.f32 %v241, %v431
    %v435 = vxor.u32 %v434, 2147483648
    %v436 = vmul.f32 %v435, 1.442695
    %v437 = vpow.pop %v436
    %v438 = vadd.f32 %v437, 1.0
    %v439 = vrcp.pop %v438
    %v440 = vmul.f32 1.0, %v439
    %442 = vrot.lane.b32.xlu0 %v431, 64
    %v443 = vpop.permute.xlu0 %442
    %v445 = vmul.f32 %v440, %v443
    %447 = vrot.lane.b32.xlu0 %v445, 64
    %v448 = vpop.permute.xlu0 %447
    %v450 = vadd.f32 %v241, %v448
    %v451 = vtanh.pop %v450
    %v452 = vsub.f32 1.0, %v440
    %454 = vrot.lane.b32.xlu0 %v451, 96
    %v455 = vpop.permute.xlu0 %454
    %v457 = vmul.f32 %v452, %v455
    %v458 = vmul.f32 %v440, 0.0
    %v459 = vadd.f32 %v457, %v458
    %461 = vrot.lane.b32.xlu0 %v357, 96
    %v462 = vpop.permute.xlu0 %461
    %v463 = vsel %vm105, %v462, 0
    %465 = vmatprep.subr.mxu0 0.0
    %466 = vmatpush1.msra.mxu0 %v243
    %467 = vmatprep.subr.mxu0 0.0
    %468 = vmatpush1.msra.mxu0 %v244
    %469 = vmatprep.subr.mxu0 0.0
    %470 = vmatpush1.msra.mxu0 %v245
    %471 = vmatprep.subr.mxu0 0.0
    %472 = vmatpush1.msra.mxu0 %v246
    %473 = vmatprep.subr.mxu0 0.0
    %474 = vmatpush1.msra.mxu0 0.0
    %475 = vmatprep.subr.mxu0 0.0
    %476 = vmatpush1.msra.mxu0 0.0
    %477 = vmatprep.subr.mxu0 0.0
    %478 = vmatpush1.msra.mxu0 0.0
    %479 = vmatprep.subr.mxu0 0.0
    %480 = vmatpush1.msra.mxu0 0.0
    %481 = vmatprep.subr.mxu0 0.0
    %482 = vmatpush1.msra.mxu0 0.0
    %483 = vmatprep.subr.mxu0 0.0
    %484 = vmatpush1.msra.mxu0 0.0
    %485 = vmatprep.subr.mxu0 0.0
    %486 = vmatpush1.msra.mxu0 0.0
    %487 = vmatprep.subr.mxu0 0.0
    %488 = vmatpush1.msra.mxu0 0.0
    %489 = vmatprep.subr.mxu0 0.0
    %490 = vmatpush1.msra.mxu0 0.0
    %491 = vmatprep.subr.mxu0 0.0
    %492 = vmatpush1.msra.mxu0 0.0
    %493 = vmatprep.subr.mxu0 0.0
    %494 = vmatpush1.msra.mxu0 0.0
    %495 = vmatprep.subr.mxu0 0.0
    %496 = vmatpush1.msra.mxu0 0.0
    %497 = vmatprep.subr.mxu0 0.0
    %498 = vmatpush1.msra.mxu0 0.0
    %499 = vmatprep.subr.mxu0 0.0
    %500 = vmatpush1.msra.mxu0 0.0
    %501 = vmatprep.subr.mxu0 0.0
    %502 = vmatpush1.msra.mxu0 0.0
    %503 = vmatprep.subr.mxu0 0.0
    %504 = vmatpush1.msra.mxu0 0.0
    %505 = vmatprep.subr.mxu0 0.0
    %506 = vmatpush1.msra.mxu0 0.0
    %507 = vmatprep.subr.mxu0 0.0
    %508 = vmatpush1.msra.mxu0 0.0
    %509 = vmatprep.subr.mxu0 0.0
    %510 = vmatpush1.msra.mxu0 0.0
    %511 = vmatprep.subr.mxu0 0.0
    %512 = vmatpush1.msra.mxu0 0.0
    %513 = vmatprep.subr.mxu0 0.0
    %514 = vmatpush1.msra.mxu0 0.0
    %515 = vmatprep.subr.mxu0 0.0
    %516 = vmatpush1.msra.mxu0 0.0
    %517 = vmatprep.subr.mxu0 0.0
    %518 = vmatpush1.msra.mxu0 0.0
    %519 = vmatprep.subr.mxu0 0.0
    %520 = vmatpush1.msra.mxu0 0.0
    %521 = vmatprep.subr.mxu0 0.0
    %522 = vmatpush1.msra.mxu0 0.0
    %523 = vmatprep.subr.mxu0 0.0
    %524 = vmatpush1.msra.mxu0 0.0
    %525 = vmatprep.subr.mxu0 0.0
    %526 = vmatpush1.msra.mxu0 0.0
    %527 = vmatprep.subr.mxu0 0.0
    %528 = vmatpush1.msra.mxu0 0.0
    %529 = vmatprep.mubr.f32.mxu0 0.0
    %530 = vmatmul.mubr.f32.gmra.mrb[0].mxu0 %v463
    %v531 = vpop.f32.mrb[0].mxu0
    %v532 = vadd.f32 %v257, %v531
    %v533 = vpop.f32.mrb[0].mxu0
    %534 = vdwg.mxu0
    %v535 = vadd.f32 %v203, %v532
    %v536 = vxor.u32 %v535, 2147483648
    %v537 = vmul.f32 %v536, 1.442695
    %v538 = vpow.pop %v537
    %v539 = vadd.f32 %v538, 1.0
    %v540 = vrcp.pop %v539
    %v541 = vmul.f32 1.0, %v540
    %543 = vrot.lane.b32.xlu0 %v532, 64
    %v544 = vpop.permute.xlu0 %543
    %v546 = vmul.f32 %v541, %v544
    %548 = vrot.lane.b32.xlu0 %v546, 64
    %v549 = vpop.permute.xlu0 %548
    %v551 = vadd.f32 %v203, %v549
    %v552 = vtanh.pop %v551
    %v553 = vsub.f32 1.0, %v541
    %555 = vrot.lane.b32.xlu0 %v552, 96
    %v556 = vpop.permute.xlu0 %555
    %v558 = vmul.f32 %v553, %v556
    %v559 = vmul.f32 %v541, %v357
    %v560 = vadd.f32 %v558, %v559
    %562 = vrot.lane.b32.xlu0 %v459, 96
    %v563 = vpop.permute.xlu0 %562
    %v564 = vsel %vm105, %v563, 0
    %566 = vmatprep.subr.mxu0 0.0
    %567 = vmatpush1.msra.mxu0 %v248
    %568 = vmatprep.subr.mxu0 0.0
    %569 = vmatpush1.msra.mxu0 %v249
    %570 = vmatprep.subr.mxu0 0.0
    %571 = vmatpush1.msra.mxu0 %v250
    %572 = vmatprep.subr.mxu0 0.0
    %573 = vmatpush1.msra.mxu0 %v251
    %574 = vmatprep.subr.mxu0 0.0
    %575 = vmatpush1.msra.mxu0 0.0
    %576 = vmatprep.subr.mxu0 0.0
    %577 = vmatpush1.msra.mxu0 0.0
    %578 = vmatprep.subr.mxu0 0.0
    %579 = vmatpush1.msra.mxu0 0.0
    %580 = vmatprep.subr.mxu0 0.0
    %581 = vmatpush1.msra.mxu0 0.0
    %582 = vmatprep.subr.mxu0 0.0
    %583 = vmatpush1.msra.mxu0 0.0
    %584 = vmatprep.subr.mxu0 0.0
    %585 = vmatpush1.msra.mxu0 0.0
    %586 = vmatprep.subr.mxu0 0.0
    %587 = vmatpush1.msra.mxu0 0.0
    %588 = vmatprep.subr.mxu0 0.0
    %589 = vmatpush1.msra.mxu0 0.0
    %590 = vmatprep.subr.mxu0 0.0
    %591 = vmatpush1.msra.mxu0 0.0
    %592 = vmatprep.subr.mxu0 0.0
    %593 = vmatpush1.msra.mxu0 0.0
    %594 = vmatprep.subr.mxu0 0.0
    %595 = vmatpush1.msra.mxu0 0.0
    %596 = vmatprep.subr.mxu0 0.0
    %597 = vmatpush1.msra.mxu0 0.0
    %598 = vmatprep.subr.mxu0 0.0
    %599 = vmatpush1.msra.mxu0 0.0
    %600 = vmatprep.subr.mxu0 0.0
    %601 = vmatpush1.msra.mxu0 0.0
    %602 = vmatprep.subr.mxu0 0.0
    %603 = vmatpush1.msra.mxu0 0.0
    %604 = vmatprep.subr.mxu0 0.0
    %605 = vmatpush1.msra.mxu0 0.0
    %606 = vmatprep.subr.mxu0 0.0
    %607 = vmatpush1.msra.mxu0 0.0
    %608 = vmatprep.subr.mxu0 0.0
    %609 = vmatpush1.msra.mxu0 0.0
    %610 = vmatprep.subr.mxu0 0.0
    %611 = vmatpush1.msra.mxu0 0.0
    %612 = vmatprep.subr.mxu0 0.0
    %613 = vmatpush1.msra.mxu0 0.0
    %614 = vmatprep.subr.mxu0 0.0
    %615 = vmatpush1.msra.mxu0 0.0
    %616 = vmatprep.subr.mxu0 0.0
    %617 = vmatpush1.msra.mxu0 0.0
    %618 = vmatprep.subr.mxu0 0.0
    %619 = vmatpush1.msra.mxu0 0.0
    %620 = vmatprep.subr.mxu0 0.0
    %621 = vmatpush1.msra.mxu0 0.0
    %622 = vmatprep.subr.mxu0 0.0
    %623 = vmatpush1.msra.mxu0 0.0
    %624 = vmatprep.subr.mxu0 0.0
    %625 = vmatpush1.msra.mxu0 0.0
    %626 = vmatprep.subr.mxu0 0.0
    %627 = vmatpush1.msra.mxu0 0.0
    %628 = vmatprep.subr.mxu0 0.0
    %629 = vmatpush1.msra.mxu0 0.0
    %630 = vmatprep.mubr.f32.mxu0 0.0
    %631 = vmatmul.mubr.f32.gmra.mrb[0].mxu0 %v564
    %v632 = vpop.f32.mrb[0].mxu0
    %v633 = vadd.f32 %v362, %v632
    %v634 = vpop.f32.mrb[0].mxu0
    %635 = vdwg.mxu0
    %v636 = vadd.f32 %v235, %v633
    %v637 = vxor.u32 %v636, 2147483648
    %v638 = vmul.f32 %v637, 1.442695
    %v639 = vpow.pop %v638
    %v640 = vadd.f32 %v639, 1.0
    %v641 = vrcp.pop %v640
    %v642 = vmul.f32 1.0, %v641
    %644 = vrot.lane.b32.xlu0 %v633, 64
    %v645 = vpop.permute.xlu0 %644
    %v647 = vmul.f32 %v642, %v645
    %649 = vrot.lane.b32.xlu0 %v647, 64
    %v650 = vpop.permute.xlu0 %649
    %v652 = vadd.f32 %v235, %v650
    %v653 = vtanh.pop %v652
    %v654 = vsub.f32 1.0, %v642
    %656 = vrot.lane.b32.xlu0 %v653, 96
    %v657 = vpop.permute.xlu0 %656
    %v659 = vmul.f32 %v654, %v657
    %v660 = vmul.f32 %v642, %v459
    %v661 = vadd.f32 %v659, %v660
    %663 = vrot.lane.b32.xlu0 %v560, 96
    %v664 = vpop.permute.xlu0 %663
    %v665 = vsel %vm105, %v664, 0
    %667 = vmatprep.subr.mxu0 0.0
    %668 = vmatpush1.msra.mxu0 %v243
    %669 = vmatprep.subr.mxu0 0.0
    %670 = vmatpush1.msra.mxu0 %v244
    %671 = vmatprep.subr.mxu0 0.0
    %672 = vmatpush1.msra.mxu0 %v245
    %673 = vmatprep.subr.mxu0 0.0
    %674 = vmatpush1.msra.mxu0 %v246
    %675 = vmatprep.subr.mxu0 0.0
    %676 = vmatpush1.msra.mxu0 0.0
    %677 = vmatprep.subr.mxu0 0.0
    %678 = vmatpush1.msra.mxu0 0.0
    %679 = vmatprep.subr.mxu0 0.0
    %680 = vmatpush1.msra.mxu0 0.0
    %681 = vmatprep.subr.mxu0 0.0
    %682 = vmatpush1.msra.mxu0 0.0
    %683 = vmatprep.subr.mxu0 0.0
    %684 = vmatpush1.msra.mxu0 0.0
    %685 = vmatprep.subr.mxu0 0.0
    %686 = vmatpush1.msra.mxu0 0.0
    %687 = vmatprep.subr.mxu0 0.0
    %688 = vmatpush1.msra.mxu0 0.0
    %689 = vmatprep.subr.mxu0 0.0
    %690 = vmatpush1.msra.mxu0 0.0
    %691 = vmatprep.subr.mxu0 0.0
    %692 = vmatpush1.msra.mxu0 0.0
    %693 = vmatprep.subr.mxu0 0.0
    %694 = vmatpush1.msra.mxu0 0.0
    %695 = vmatprep.subr.mxu0 0.0
    %696 = vmatpush1.msra.mxu0 0.0
    %697 = vmatprep.subr.mxu0 0.0
    %698 = vmatpush1.msra.mxu0 0.0
    %699 = vmatprep.subr.mxu0 0.0
    %700 = vmatpush1.msra.mxu0 0.0
    %701 = vmatprep.subr.mxu0 0.0
    %702 = vmatpush1.msra.mxu0 0.0
    %703 = vmatprep.subr.mxu0 0.0
    %704 = vmatpush1.msra.mxu0 0.0
    %705 = vmatprep.subr.mxu0 0.0
    %706 = vmatpush1.msra.mxu0 0.0
    %707 = vmatprep.subr.mxu0 0.0
    %708 = vmatpush1.msra.mxu0 0.0
    %709 = vmatprep.subr.mxu0 0.0
    %710 = vmatpush1.msra.mxu0 0.0
    %711 = vmatprep.subr.mxu0 0.0
    %712 = vmatpush1.msra.mxu0 0.0
    %713 = vmatprep.subr.mxu0 0.0
    %714 = vmatpush1.msra.mxu0 0.0
    %715 = vmatprep.subr.mxu0 0.0
    %716 = vmatpush1.msra.mxu0 0.0
    %717 = vmatprep.subr.mxu0 0.0
    %718 = vmatpush1.msra.mxu0 0.0
    %719 = vmatprep.subr.mxu0 0.0
    %720 = vmatpush1.msra.mxu0 0.0
    %721 = vmatprep.subr.mxu0 0.0
    %722 = vmatpush1.msra.mxu0 0.0
    %723 = vmatprep.subr.mxu0 0.0
    %724 = vmatpush1.msra.mxu0 0.0
    %725 = vmatprep.subr.mxu0 0.0
    %726 = vmatpush1.msra.mxu0 0.0
    %727 = vmatprep.subr.mxu0 0.0
    %728 = vmatpush1.msra.mxu0 0.0
    %729 = vmatprep.subr.mxu0 0.0
    %730 = vmatpush1.msra.mxu0 0.0
    %731 = vmatprep.mubr.f32.mxu0 0.0
    %732 = vmatmul.mubr.f32.gmra.mrb[0].mxu0 %v665
    %v733 = vpop.f32.mrb[0].mxu0
    %v734 = vadd.f32 %v257, %v733
    %v735 = vpop.f32.mrb[0].mxu0
    %736 = vdwg.mxu0
    %v737 = vadd.f32 %v209, %v734
    %v738 = vxor.u32 %v737, 2147483648
    %v739 = vmul.f32 %v738, 1.442695
    %v740 = vpow.pop %v739
    %v741 = vadd.f32 %v740, 1.0
    %v742 = vrcp.pop %v741
    %v743 = vmul.f32 1.0, %v742
    %745 = vrot.lane.b32.xlu0 %v734, 64
    %v746 = vpop.permute.xlu0 %745
    %v748 = vmul.f32 %v743, %v746
    %750 = vrot.lane.b32.xlu0 %v748, 64
    %v751 = vpop.permute.xlu0 %750
    %v753 = vadd.f32 %v209, %v751
    %v754 = vtanh.pop %v753
    %v755 = vsub.f32 1.0, %v743
    %757 = vrot.lane.b32.xlu0 %v754, 96
    %v758 = vpop.permute.xlu0 %757
    %v760 = vmul.f32 %v755, %v758
    %v761 = vmul.f32 %v743, %v560
    %v762 = vadd.f32 %v760, %v761
    %764 = vrot.lane.b32.xlu0 %v661, 96
    %v765 = vpop.permute.xlu0 %764
    %v766 = vsel %vm105, %v765, 0
    %768 = vmatprep.subr.mxu0 0.0
    %769 = vmatpush1.msra.mxu0 %v248
    %770 = vmatprep.subr.mxu0 0.0
    %771 = vmatpush1.msra.mxu0 %v249
    %772 = vmatprep.subr.mxu0 0.0
    %773 = vmatpush1.msra.mxu0 %v250
    %774 = vmatprep.subr.mxu0 0.0
    %775 = vmatpush1.msra.mxu0 %v251
    %776 = vmatprep.subr.mxu0 0.0
    %777 = vmatpush1.msra.mxu0 0.0
    %778 = vmatprep.subr.mxu0 0.0
    %779 = vmatpush1.msra.mxu0 0.0
    %780 = vmatprep.subr.mxu0 0.0
    %781 = vmatpush1.msra.mxu0 0.0
    %782 = vmatprep.subr.mxu0 0.0
    %783 = vmatpush1.msra.mxu0 0.0
    %784 = vmatprep.subr.mxu0 0.0
    %785 = vmatpush1.msra.mxu0 0.0
    %786 = vmatprep.subr.mxu0 0.0
    %787 = vmatpush1.msra.mxu0 0.0
    %788 = vmatprep.subr.mxu0 0.0
    %789 = vmatpush1.msra.mxu0 0.0
    %790 = vmatprep.subr.mxu0 0.0
    %791 = vmatpush1.msra.mxu0 0.0
    %792 = vmatprep.subr.mxu0 0.0
    %793 = vmatpush1.msra.mxu0 0.0
    %794 = vmatprep.subr.mxu0 0.0
    %795 = vmatpush1.msra.mxu0 0.0
    %796 = vmatprep.subr.mxu0 0.0
    %797 = vmatpush1.msra.mxu0 0.0
    %798 = vmatprep.subr.mxu0 0.0
    %799 = vmatpush1.msra.mxu0 0.0
    %800 = vmatprep.subr.mxu0 0.0
    %801 = vmatpush1.msra.mxu0 0.0
    %802 = vmatprep.subr.mxu0 0.0
    %803 = vmatpush1.msra.mxu0 0.0
    %804 = vmatprep.subr.mxu0 0.0
    %805 = vmatpush1.msra.mxu0 0.0
    %806 = vmatprep.subr.mxu0 0.0
    %807 = vmatpush1.msra.mxu0 0.0
    %808 = vmatprep.subr.mxu0 0.0
    %809 = vmatpush1.msra.mxu0 0.0
    %810 = vmatprep.subr.mxu0 0.0
    %811 = vmatpush1.msra.mxu0 0.0
    %812 = vmatprep.subr.mxu0 0.0
    %813 = vmatpush1.msra.mxu0 0.0
    %814 = vmatprep.subr.mxu0 0.0
    %815 = vmatpush1.msra.mxu0 0.0
    %816 = vmatprep.subr.mxu0 0.0
    %817 = vmatpush1.msra.mxu0 0.0
    %818 = vmatprep.subr.mxu0 0.0
    %819 = vmatpush1.msra.mxu0 0.0
    %820 = vmatprep.subr.mxu0 0.0
    %821 = vmatpush1.msra.mxu0 0.0
    %822 = vmatprep.subr.mxu0 0.0
    %823 = vmatpush1.msra.mxu0 0.0
    %824 = vmatprep.subr.mxu0 0.0
    %825 = vmatpush1.msra.mxu0 0.0
    %826 = vmatprep.subr.mxu0 0.0
    %827 = vmatpush1.msra.mxu0 0.0
    %828 = vmatprep.subr.mxu0 0.0
    %829 = vmatpush1.msra.mxu0 0.0
    %830 = vmatprep.subr.mxu0 0.0
    %831 = vmatpush1.msra.mxu0 0.0
    %832 = vmatprep.mubr.f32.mxu0 0.0
    %833 = vmatmul.mubr.f32.gmra.mrb[0].mxu0 %v766
    %v834 = vpop.f32.mrb[0].mxu0
    %v835 = vadd.f32 %v362, %v834
    %v836 = vpop.f32.mrb[0].mxu0
    %837 = vdwg.mxu0
    %v838 = vadd.f32 %v229, %v835
    %v839 = vxor.u32 %v838, 2147483648
    %v840 = vmul.f32 %v839, 1.442695
    %v841 = vpow.pop %v840
    %v842 = vadd.f32 %v841, 1.0
    %v843 = vrcp.pop %v842
    %v844 = vmul.f32 1.0, %v843
    %846 = vrot.lane.b32.xlu0 %v835, 64
    %v847 = vpop.permute.xlu0 %846
    %v849 = vmul.f32 %v844, %v847
    %851 = vrot.lane.b32.xlu0 %v849, 64
    %v852 = vpop.permute.xlu0 %851
    %v854 = vadd.f32 %v229, %v852
    %v855 = vtanh.pop %v854
    %v856 = vsub.f32 1.0, %v844
    %858 = vrot.lane.b32.xlu0 %v855, 96
    %v859 = vpop.permute.xlu0 %858
    %v861 = vmul.f32 %v856, %v859
    %v862 = vmul.f32 %v844, %v661
    %v863 = vadd.f32 %v861, %v862
    %865 = vrot.lane.b32.xlu0 %v762, 96
    %v866 = vpop.permute.xlu0 %865
    %v867 = vsel %vm105, %v866, 0
    %869 = vmatprep.subr.mxu0 0.0
    %870 = vmatpush1.msra.mxu0 %v243
    %871 = vmatprep.subr.mxu0 0.0
    %872 = vmatpush1.msra.mxu0 %v244
    %873 = vmatprep.subr.mxu0 0.0
    %874 = vmatpush1.msra.mxu0 %v245
    %875 = vmatprep.subr.mxu0 0.0
    %876 = vmatpush1.msra.mxu0 %v246
    %877 = vmatprep.subr.mxu0 0.0
    %878 = vmatpush1.msra.mxu0 0.0
    %879 = vmatprep.subr.mxu0 0.0
    %880 = vmatpush1.msra.mxu0 0.0
    %881 = vmatprep.subr.mxu0 0.0
    %882 = vmatpush1.msra.mxu0 0.0
    %883 = vmatprep.subr.mxu0 0.0
    %884 = vmatpush1.msra.mxu0 0.0
    %885 = vmatprep.subr.mxu0 0.0
    %886 = vmatpush1.msra.mxu0 0.0
    %887 = vmatprep.subr.mxu0 0.0
    %888 = vmatpush1.msra.mxu0 0.0
    %889 = vmatprep.subr.mxu0 0.0
    %890 = vmatpush1.msra.mxu0 0.0
    %891 = vmatprep.subr.mxu0 0.0
    %892 = vmatpush1.msra.mxu0 0.0
    %893 = vmatprep.subr.mxu0 0.0
    %894 = vmatpush1.msra.mxu0 0.0
    %895 = vmatprep.subr.mxu0 0.0
    %896 = vmatpush1.msra.mxu0 0.0
    %897 = vmatprep.subr.mxu0 0.0
    %898 = vmatpush1.msra.mxu0 0.0
    %899 = vmatprep.subr.mxu0 0.0
    %900 = vmatpush1.msra.mxu0 0.0
    %901 = vmatprep.subr.mxu0 0.0
    %902 = vmatpush1.msra.mxu0 0.0
    %903 = vmatprep.subr.mxu0 0.0
    %904 = vmatpush1.msra.mxu0 0.0
    %905 = vmatprep.subr.mxu0 0.0
    %906 = vmatpush1.msra.mxu0 0.0
    %907 = vmatprep.subr.mxu0 0.0
    %908 = vmatpush1.msra.mxu0 0.0
    %909 = vmatprep.subr.mxu0 0.0
    %910 = vmatpush1.msra.mxu0 0.0
    %911 = vmatprep.subr.mxu0 0.0
    %912 = vmatpush1.msra.mxu0 0.0
    %913 = vmatprep.subr.mxu0 0.0
    %914 = vmatpush1.msra.mxu0 0.0
    %915 = vmatprep.subr.mxu0 0.0
    %916 = vmatpush1.msra.mxu0 0.0
    %917 = vmatprep.subr.mxu0 0.0
    %918 = vmatpush1.msra.mxu0 0.0
    %919 = vmatprep.subr.mxu0 0.0
    %920 = vmatpush1.msra.mxu0 0.0
    %921 = vmatprep.subr.mxu0 0.0
    %922 = vmatpush1.msra.mxu0 0.0
    %923 = vmatprep.subr.mxu0 0.0
    %924 = vmatpush1.msra.mxu0 0.0
    %925 = vmatprep.subr.mxu0 0.0
    %926 = vmatpush1.msra.mxu0 0.0
    %927 = vmatprep.subr.mxu0 0.0
    %928 = vmatpush1.msra.mxu0 0.0
    %929 = vmatprep.subr.mxu0 0.0
    %930 = vmatpush1.msra.mxu0 0.0
    %931 = vmatprep.subr.mxu0 0.0
    %932 = vmatpush1.msra.mxu0 0.0
    %933 = vmatprep.mubr.f32.mxu0 0.0
    %934 = vmatmul.mubr.f32.gmra.mrb[0].mxu0 %v867
    %v935 = vpop.f32.mrb[0].mxu0
    %v936 = vadd.f32 %v257, %v935
    %v937 = vpop.f32.mrb[0].mxu0
    %938 = vdwg.mxu0
    %v939 = vadd.f32 %v215, %v936
    %v940 = vxor.u32 %v939, 2147483648
    %v941 = vmul.f32 %v940, 1.442695
    %v942 = vpow.pop %v941
    %v943 = vadd.f32 %v942, 1.0
    %v944 = vrcp.pop %v943
    %v945 = vmul.f32 1.0, %v944
    %947 = vrot.lane.b32.xlu0 %v936, 64
    %v948 = vpop.permute.xlu0 %947
    %v950 = vmul.f32 %v945, %v948
    %952 = vrot.lane.b32.xlu0 %v950, 64
    %v953 = vpop.permute.xlu0 %952
    %v955 = vadd.f32 %v215, %v953
    %v956 = vtanh.pop %v955
    %v957 = vsub.f32 1.0, %v945
    %959 = vrot.lane.b32.xlu0 %v956, 96
    %v960 = vpop.permute.xlu0 %959
    %v962 = vmul.f32 %v957, %v960
    %v963 = vmul.f32 %v945, %v762
    %v964 = vadd.f32 %v962, %v963
    %966 = vrot.lane.b32.xlu0 %v863, 96
    %v967 = vpop.permute.xlu0 %966
    %v968 = vsel %vm105, %v967, 0
    %970 = vmatprep.subr.mxu0 0.0
    %971 = vmatpush1.msra.mxu0 %v248
    %972 = vmatprep.subr.mxu0 0.0
    %973 = vmatpush1.msra.mxu0 %v249
    %974 = vmatprep.subr.mxu0 0.0
    %975 = vmatpush1.msra.mxu0 %v250
    %976 = vmatprep.subr.mxu0 0.0
    %977 = vmatpush1.msra.mxu0 %v251
    %978 = vmatprep.subr.mxu0 0.0
    %979 = vmatpush1.msra.mxu0 0.0
    %980 = vmatprep.subr.mxu0 0.0
    %981 = vmatpush1.msra.mxu0 0.0
    %982 = vmatprep.subr.mxu0 0.0
    %983 = vmatpush1.msra.mxu0 0.0
    %984 = vmatprep.subr.mxu0 0.0
    %985 = vmatpush1.msra.mxu0 0.0
    %986 = vmatprep.subr.mxu0 0.0
    %987 = vmatpush1.msra.mxu0 0.0
    %988 = vmatprep.subr.mxu0 0.0
    %989 = vmatpush1.msra.mxu0 0.0
    %990 = vmatprep.subr.mxu0 0.0
    %991 = vmatpush1.msra.mxu0 0.0
    %992 = vmatprep.subr.mxu0 0.0
    %993 = vmatpush1.msra.mxu0 0.0
    %994 = vmatprep.subr.mxu0 0.0
    %995 = vmatpush1.msra.mxu0 0.0
    %996 = vmatprep.subr.mxu0 0.0
    %997 = vmatpush1.msra.mxu0 0.0
    %998 = vmatprep.subr.mxu0 0.0
    %999 = vmatpush1.msra.mxu0 0.0
    %1000 = vmatprep.subr.mxu0 0.0
    %1001 = vmatpush1.msra.mxu0 0.0
    %1002 = vmatprep.subr.mxu0 0.0
    %1003 = vmatpush1.msra.mxu0 0.0
    %1004 = vmatprep.subr.mxu0 0.0
    %1005 = vmatpush1.msra.mxu0 0.0
    %1006 = vmatprep.subr.mxu0 0.0
    %1007 = vmatpush1.msra.mxu0 0.0
    %1008 = vmatprep.subr.mxu0 0.0
    %1009 = vmatpush1.msra.mxu0 0.0
    %1010 = vmatprep.subr.mxu0 0.0
    %1011 = vmatpush1.msra.mxu0 0.0
    %1012 = vmatprep.subr.mxu0 0.0
    %1013 = vmatpush1.msra.mxu0 0.0
    %1014 = vmatprep.subr.mxu0 0.0
    %1015 = vmatpush1.msra.mxu0 0.0
    %1016 = vmatprep.subr.mxu0 0.0
    %1017 = vmatpush1.msra.mxu0 0.0
    %1018 = vmatprep.subr.mxu0 0.0
    %1019 = vmatpush1.msra.mxu0 0.0
    %1020 = vmatprep.subr.mxu0 0.0
    %1021 = vmatpush1.msra.mxu0 0.0
    %1022 = vmatprep.subr.mxu0 0.0
    %1023 = vmatpush1.msra.mxu0 0.0
    %1024 = vmatprep.subr.mxu0 0.0
    %1025 = vmatpush1.msra.mxu0 0.0
    %1026 = vmatprep.subr.mxu0 0.0
    %1027 = vmatpush1.msra.mxu0 0.0
    %1028 = vmatprep.subr.mxu0 0.0
    %1029 = vmatpush1.msra.mxu0 0.0
    %1030 = vmatprep.subr.mxu0 0.0
    %1031 = vmatpush1.msra.mxu0 0.0
    %1032 = vmatprep.subr.mxu0 0.0
    %1033 = vmatpush1.msra.mxu0 0.0
    %1034 = vmatprep.mubr.f32.mxu0 0.0
    %1035 = vmatmul.mubr.f32.gmra.mrb[0].mxu0 %v968
    %v1036 = vpop.f32.mrb[0].mxu0
    %v1037 = vadd.f32 %v362, %v1036
    %v1038 = vpop.f32.mrb[0].mxu0
    %1039 = vdwg.mxu0
    %v1040 = vadd.f32 %v223, %v1037
    %v1041 = vxor.u32 %v1040, 2147483648
    %v1042 = vmul.f32 %v1041, 1.442695
    %v1043 = vpow.pop %v1042
    %v1044 = vadd.f32 %v1043, 1.0
    %v1045 = vrcp.pop %v1044
    %v1046 = vmul.f32 1.0, %v1045
    %1048 = vrot.lane.b32.xlu0 %v1037, 64
    %v1049 = vpop.permute.xlu0 %1048
    %v1051 = vmul.f32 %v1046, %v1049
    %1053 = vrot.lane.b32.xlu0 %v1051, 64
    %v1054 = vpop.permute.xlu0 %1053
    %v1056 = vadd.f32 %v223, %v1054
    %v1057 = vtanh.pop %v1056
    %v1058 = vsub.f32 1.0, %v1046
    %1060 = vrot.lane.b32.xlu0 %v1057, 96
    %v1061 = vpop.permute.xlu0 %1060
    %v1063 = vmul.f32 %v1058, %v1061
    %v1064 = vmul.f32 %v1046, %v863
    %v1065 = vadd.f32 %v1063, %v1064
    %1067 = vrot.lane.b32.xlu0 %v964, 96
    %v1068 = vpop.permute.xlu0 %1067
    %v1069 = vsel %vm105, %v1068, 0
    %1071 = vmatprep.subr.mxu0 0.0
    %1072 = vmatpush1.msra.mxu0 %v243
    %1073 = vmatprep.subr.mxu0 0.0
    %1074 = vmatpush1.msra.mxu0 %v244
    %1075 = vmatprep.subr.mxu0 0.0
    %1076 = vmatpush1.msra.mxu0 %v245
    %1077 = vmatprep.subr.mxu0 0.0
    %1078 = vmatpush1.msra.mxu0 %v246
    %1079 = vmatprep.subr.mxu0 0.0
    %1080 = vmatpush1.msra.mxu0 0.0
    %1081 = vmatprep.subr.mxu0 0.0
    %1082 = vmatpush1.msra.mxu0 0.0
    %1083 = vmatprep.subr.mxu0 0.0
    %1084 = vmatpush1.msra.mxu0 0.0
    %1085 = vmatprep.subr.mxu0 0.0
    %1086 = vmatpush1.msra.mxu0 0.0
    %1087 = vmatprep.subr.mxu0 0.0
    %1088 = vmatpush1.msra.mxu0 0.0
    %1089 = vmatprep.subr.mxu0 0.0
    %1090 = vmatpush1.msra.mxu0 0.0
    %1091 = vmatprep.subr.mxu0 0.0
    %1092 = vmatpush1.msra.mxu0 0.0
    %1093 = vmatprep.subr.mxu0 0.0
    %1094 = vmatpush1.msra.mxu0 0.0
    %1095 = vmatprep.subr.mxu0 0.0
    %1096 = vmatpush1.msra.mxu0 0.0
    %1097 = vmatprep.subr.mxu0 0.0
    %1098 = vmatpush1.msra.mxu0 0.0
    %1099 = vmatprep.subr.mxu0 0.0
    %1100 = vmatpush1.msra.mxu0 0.0
    %1101 = vmatprep.subr.mxu0 0.0
    %1102 = vmatpush1.msra.mxu0 0.0
    %1103 = vmatprep.subr.mxu0 0.0
    %1104 = vmatpush1.msra.mxu0 0.0
    %1105 = vmatprep.subr.mxu0 0.0
    %1106 = vmatpush1.msra.mxu0 0.0
    %1107 = vmatprep.subr.mxu0 0.0
    %1108 = vmatpush1.msra.mxu0 0.0
    %1109 = vmatprep.subr.mxu0 0.0
    %1110 = vmatpush1.msra.mxu0 0.0
    %1111 = vmatprep.subr.mxu0 0.0
    %1112 = vmatpush1.msra.mxu0 0.0
    %1113 = vmatprep.subr.mxu0 0.0
    %1114 = vmatpush1.msra.mxu0 0.0
    %1115 = vmatprep.subr.mxu0 0.0
    %1116 = vmatpush1.msra.mxu0 0.0
    %1117 = vmatprep.subr.mxu0 0.0
    %1118 = vmatpush1.msra.mxu0 0.0
    %1119 = vmatprep.subr.mxu0 0.0
    %1120 = vmatpush1.msra.mxu0 0.0
    %1121 = vmatprep.subr.mxu0 0.0
    %1122 = vmatpush1.msra.mxu0 0.0
    %1123 = vmatprep.subr.mxu0 0.0
    %1124 = vmatpush1.msra.mxu0 0.0
    %1125 = vmatprep.subr.mxu0 0.0
    %1126 = vmatpush1.msra.mxu0 0.0
    %1127 = vmatprep.subr.mxu0 0.0
    %1128 = vmatpush1.msra.mxu0 0.0
    %1129 = vmatprep.subr.mxu0 0.0
    %1130 = vmatpush1.msra.mxu0 0.0
    %1131 = vmatprep.subr.mxu0 0.0
    %1132 = vmatpush1.msra.mxu0 0.0
    %1133 = vmatprep.subr.mxu0 0.0
    %1134 = vmatpush1.msra.mxu0 0.0
    %1135 = vmatprep.mubr.f32.mxu0 0.0
    %1136 = vmatmul.mubr.f32.gmra.mrb[0].mxu0 %v1069
    %v1137 = vpop.f32.mrb[0].mxu0
    %v1138 = vadd.f32 %v257, %v1137
    %v1139 = vpop.f32.mrb[0].mxu0
    %1140 = vdwg.mxu0
    %v1141 = vadd.f32 %v221, %v1138
    %v1142 = vxor.u32 %v1141, 2147483648
    %v1143 = vmul.f32 %v1142, 1.442695
    %v1144 = vpow.pop %v1143
    %v1145 = vadd.f32 %v1144, 1.0
    %v1146 = vrcp.pop %v1145
    %v1147 = vmul.f32 1.0, %v1146
    %1149 = vrot.lane.b32.xlu0 %v1138, 64
    %v1150 = vpop.permute.xlu0 %1149
    %v1152 = vmul.f32 %v1147, %v1150
    %1154 = vrot.lane.b32.xlu0 %v1152, 64
    %v1155 = vpop.permute.xlu0 %1154
    %v1157 = vadd.f32 %v221, %v1155
    %v1158 = vtanh.pop %v1157
    %v1159 = vsub.f32 1.0, %v1147
    %1161 = vrot.lane.b32.xlu0 %v1158, 96
    %v1162 = vpop.permute.xlu0 %1161
    %v1164 = vmul.f32 %v1159, %v1162
    %v1165 = vmul.f32 %v1147, %v964
    %v1166 = vadd.f32 %v1164, %v1165
    %1168 = vrot.lane.b32.xlu0 %v1065, 96
    %v1169 = vpop.permute.xlu0 %1168
    %v1170 = vsel %vm105, %v1169, 0
    %1172 = vmatprep.subr.mxu0 0.0
    %1173 = vmatpush1.msra.mxu0 %v248
    %1174 = vmatprep.subr.mxu0 0.0
    %1175 = vmatpush1.msra.mxu0 %v249
    %1176 = vmatprep.subr.mxu0 0.0
    %1177 = vmatpush1.msra.mxu0 %v250
    %1178 = vmatprep.subr.mxu0 0.0
    %1179 = vmatpush1.msra.mxu0 %v251
    %1180 = vmatprep.subr.mxu0 0.0
    %1181 = vmatpush1.msra.mxu0 0.0
    %1182 = vmatprep.subr.mxu0 0.0
    %1183 = vmatpush1.msra.mxu0 0.0
    %1184 = vmatprep.subr.mxu0 0.0
    %1185 = vmatpush1.msra.mxu0 0.0
    %1186 = vmatprep.subr.mxu0 0.0
    %1187 = vmatpush1.msra.mxu0 0.0
    %1188 = vmatprep.subr.mxu0 0.0
    %1189 = vmatpush1.msra.mxu0 0.0
    %1190 = vmatprep.subr.mxu0 0.0
    %1191 = vmatpush1.msra.mxu0 0.0
    %1192 = vmatprep.subr.mxu0 0.0
    %1193 = vmatpush1.msra.mxu0 0.0
    %1194 = vmatprep.subr.mxu0 0.0
    %1195 = vmatpush1.msra.mxu0 0.0
    %1196 = vmatprep.subr.mxu0 0.0
    %1197 = vmatpush1.msra.mxu0 0.0
    %1198 = vmatprep.subr.mxu0 0.0
    %1199 = vmatpush1.msra.mxu0 0.0
    %1200 = vmatprep.subr.mxu0 0.0
    %1201 = vmatpush1.msra.mxu0 0.0
    %1202 = vmatprep.subr.mxu0 0.0
    %1203 = vmatpush1.msra.mxu0 0.0
    %1204 = vmatprep.subr.mxu0 0.0
    %1205 = vmatpush1.msra.mxu0 0.0
    %1206 = vmatprep.subr.mxu0 0.0
    %1207 = vmatpush1.msra.mxu0 0.0
    %1208 = vmatprep.subr.mxu0 0.0
    %1209 = vmatpush1.msra.mxu0 0.0
    %1210 = vmatprep.subr.mxu0 0.0
    %1211 = vmatpush1.msra.mxu0 0.0
    %1212 = vmatprep.subr.mxu0 0.0
    %1213 = vmatpush1.msra.mxu0 0.0
    %1214 = vmatprep.subr.mxu0 0.0
    %1215 = vmatpush1.msra.mxu0 0.0
    %1216 = vmatprep.subr.mxu0 0.0
    %1217 = vmatpush1.msra.mxu0 0.0
    %1218 = vmatprep.subr.mxu0 0.0
    %1219 = vmatpush1.msra.mxu0 0.0
    %1220 = vmatprep.subr.mxu0 0.0
    %1221 = vmatpush1.msra.mxu0 0.0
    %1222 = vmatprep.subr.mxu0 0.0
    %1223 = vmatpush1.msra.mxu0 0.0
    %1224 = vmatprep.subr.mxu0 0.0
    %1225 = vmatpush1.msra.mxu0 0.0
    %1226 = vmatprep.subr.mxu0 0.0
    %1227 = vmatpush1.msra.mxu0 0.0
    %1228 = vmatprep.subr.mxu0 0.0
    %1229 = vmatpush1.msra.mxu0 0.0
    %1230 = vmatprep.subr.mxu0 0.0
    %1231 = vmatpush1.msra.mxu0 0.0
    %1232 = vmatprep.subr.mxu0 0.0
    %1233 = vmatpush1.msra.mxu0 0.0
    %1234 = vmatprep.subr.mxu0 0.0
    %1235 = vmatpush1.msra.mxu0 0.0
    %1236 = vmatprep.mubr.f32.mxu0 0.0
    %1237 = vmatmul.mubr.f32.gmra.mrb[0].mxu0 %v1170
    %v1238 = vpop.f32.mrb[0].mxu0
    %v1239 = vadd.f32 %v362, %v1238
    %v1240 = vpop.f32.mrb[0].mxu0
    %1241 = vdwg.mxu0
    %v1242 = vadd.f32 %v217, %v1239
    %v1243 = vxor.u32 %v1242, 2147483648
    %v1244 = vmul.f32 %v1243, 1.442695
    %v1245 = vpow.pop %v1244
    %v1246 = vadd.f32 %v1245, 1.0
    %v1247 = vrcp.pop %v1246
    %v1248 = vmul.f32 1.0, %v1247
    %1250 = vrot.lane.b32.xlu0 %v1239, 64
    %v1251 = vpop.permute.xlu0 %1250
    %v1253 = vmul.f32 %v1248, %v1251
    %1255 = vrot.lane.b32.xlu0 %v1253, 64
    %v1256 = vpop.permute.xlu0 %1255
    %v1258 = vadd.f32 %v217, %v1256
    %v1259 = vtanh.pop %v1258
    %v1260 = vsub.f32 1.0, %v1248
    %1262 = vrot.lane.b32.xlu0 %v1259, 96
    %v1263 = vpop.permute.xlu0 %1262
    %v1265 = vmul.f32 %v1260, %v1263
    %v1266 = vmul.f32 %v1248, %v1065
    %v1267 = vadd.f32 %v1265, %v1266
    %1269 = vrot.lane.b32.xlu0 %v1166, 96
    %v1270 = vpop.permute.xlu0 %1269
    %v1271 = vsel %vm105, %v1270, 0
    %1273 = vmatprep.subr.mxu0 0.0
    %1274 = vmatpush1.msra.mxu0 %v243
    %1275 = vmatprep.subr.mxu0 0.0
    %1276 = vmatpush1.msra.mxu0 %v244
    %1277 = vmatprep.subr.mxu0 0.0
    %1278 = vmatpush1.msra.mxu0 %v245
    %1279 = vmatprep.subr.mxu0 0.0
    %1280 = vmatpush1.msra.mxu0 %v246
    %1281 = vmatprep.subr.mxu0 0.0
    %1282 = vmatpush1.msra.mxu0 0.0
    %1283 = vmatprep.subr.mxu0 0.0
    %1284 = vmatpush1.msra.mxu0 0.0
    %1285 = vmatprep.subr.mxu0 0.0
    %1286 = vmatpush1.msra.mxu0 0.0
    %1287 = vmatprep.subr.mxu0 0.0
    %1288 = vmatpush1.msra.mxu0 0.0
    %1289 = vmatprep.subr.mxu0 0.0
    %1290 = vmatpush1.msra.mxu0 0.0
    %1291 = vmatprep.subr.mxu0 0.0
    %1292 = vmatpush1.msra.mxu0 0.0
    %1293 = vmatprep.subr.mxu0 0.0
    %1294 = vmatpush1.msra.mxu0 0.0
    %1295 = vmatprep.subr.mxu0 0.0
    %1296 = vmatpush1.msra.mxu0 0.0
    %1297 = vmatprep.subr.mxu0 0.0
    %1298 = vmatpush1.msra.mxu0 0.0
    %1299 = vmatprep.subr.mxu0 0.0
    %1300 = vmatpush1.msra.mxu0 0.0
    %1301 = vmatprep.subr.mxu0 0.0
    %1302 = vmatpush1.msra.mxu0 0.0
    %1303 = vmatprep.subr.mxu0 0.0
    %1304 = vmatpush1.msra.mxu0 0.0
    %1305 = vmatprep.subr.mxu0 0.0
    %1306 = vmatpush1.msra.mxu0 0.0
    %1307 = vmatprep.subr.mxu0 0.0
    %1308 = vmatpush1.msra.mxu0 0.0
    %1309 = vmatprep.subr.mxu0 0.0
    %1310 = vmatpush1.msra.mxu0 0.0
    %1311 = vmatprep.subr.mxu0 0.0
    %1312 = vmatpush1.msra.mxu0 0.0
    %1313 = vmatprep.subr.mxu0 0.0
    %1314 = vmatpush1.msra.mxu0 0.0
    %1315 = vmatprep.subr.mxu0 0.0
    %1316 = vmatpush1.msra.mxu0 0.0
    %1317 = vmatprep.subr.mxu0 0.0
    %1318 = vmatpush1.msra.mxu0 0.0
    %1319 = vmatprep.subr.mxu0 0.0
    %1320 = vmatpush1.msra.mxu0 0.0
    %1321 = vmatprep.subr.mxu0 0.0
    %1322 = vmatpush1.msra.mxu0 0.0
    %1323 = vmatprep.subr.mxu0 0.0
    %1324 = vmatpush1.msra.mxu0 0.0
    %1325 = vmatprep.subr.mxu0 0.0
    %1326 = vmatpush1.msra.mxu0 0.0
    %1327 = vmatprep.subr.mxu0 0.0
    %1328 = vmatpush1.msra.mxu0 0.0
    %1329 = vmatprep.subr.mxu0 0.0
    %1330 = vmatpush1.msra.mxu0 0.0
    %1331 = vmatprep.subr.mxu0 0.0
    %1332 = vmatpush1.msra.mxu0 0.0
    %1333 = vmatprep.subr.mxu0 0.0
    %1334 = vmatpush1.msra.mxu0 0.0
    %1335 = vmatprep.subr.mxu0 0.0
    %1336 = vmatpush1.msra.mxu0 0.0
    %1337 = vmatprep.mubr.f32.mxu0 0.0
    %1338 = vmatmul.mubr.f32.gmra.mrb[0].mxu0 %v1271
    %v1339 = vpop.f32.mrb[0].mxu0
    %v1340 = vadd.f32 %v257, %v1339
    %v1341 = vpop.f32.mrb[0].mxu0
    %1342 = vdwg.mxu0
    %v1343 = vadd.f32 %v227, %v1340
    %v1344 = vxor.u32 %v1343, 2147483648
    %v1345 = vmul.f32 %v1344, 1.442695
    %v1346 = vpow.pop %v1345
    %v1347 = vadd.f32 %v1346, 1.0
    %v1348 = vrcp.pop %v1347
    %v1349 = vmul.f32 1.0, %v1348
    %1351 = vrot.lane.b32.xlu0 %v1340, 64
    %v1352 = vpop.permute.xlu0 %1351
    %v1354 = vmul.f32 %v1349, %v1352
    %1356 = vrot.lane.b32.xlu0 %v1354, 64
    %v1357 = vpop.permute.xlu0 %1356
    %v1359 = vadd.f32 %v227, %v1357
    %v1360 = vtanh.pop %v1359
    %v1361 = vsub.f32 1.0, %v1349
    %1363 = vrot.lane.b32.xlu0 %v1360, 96
    %v1364 = vpop.permute.xlu0 %1363
    %v1366 = vmul.f32 %v1361, %v1364
    %v1367 = vmul.f32 %v1349, %v1166
    %v1368 = vadd.f32 %v1366, %v1367
    %1370 = vrot.lane.b32.xlu0 %v1267, 96
    %v1371 = vpop.permute.xlu0 %1370
    %v1372 = vsel %vm105, %v1371, 0
    %1374 = vmatprep.subr.mxu0 0.0
    %1375 = vmatpush1.msra.mxu0 %v248
    %1376 = vmatprep.subr.mxu0 0.0
    %1377 = vmatpush1.msra.mxu0 %v249
    %1378 = vmatprep.subr.mxu0 0.0
    %1379 = vmatpush1.msra.mxu0 %v250
    %1380 = vmatprep.subr.mxu0 0.0
    %1381 = vmatpush1.msra.mxu0 %v251
    %1382 = vmatprep.subr.mxu0 0.0
    %1383 = vmatpush1.msra.mxu0 0.0
    %1384 = vmatprep.subr.mxu0 0.0
    %1385 = vmatpush1.msra.mxu0 0.0
    %1386 = vmatprep.subr.mxu0 0.0
    %1387 = vmatpush1.msra.mxu0 0.0
    %1388 = vmatprep.subr.mxu0 0.0
    %1389 = vmatpush1.msra.mxu0 0.0
    %1390 = vmatprep.subr.mxu0 0.0
    %1391 = vmatpush1.msra.mxu0 0.0
    %1392 = vmatprep.subr.mxu0 0.0
    %1393 = vmatpush1.msra.mxu0 0.0
    %1394 = vmatprep.subr.mxu0 0.0
    %1395 = vmatpush1.msra.mxu0 0.0
    %1396 = vmatprep.subr.mxu0 0.0
    %1397 = vmatpush1.msra.mxu0 0.0
    %1398 = vmatprep.subr.mxu0 0.0
    %1399 = vmatpush1.msra.mxu0 0.0
    %1400 = vmatprep.subr.mxu0 0.0
    %1401 = vmatpush1.msra.mxu0 0.0
    %1402 = vmatprep.subr.mxu0 0.0
    %1403 = vmatpush1.msra.mxu0 0.0
    %1404 = vmatprep.subr.mxu0 0.0
    %1405 = vmatpush1.msra.mxu0 0.0
    %1406 = vmatprep.subr.mxu0 0.0
    %1407 = vmatpush1.msra.mxu0 0.0
    %1408 = vmatprep.subr.mxu0 0.0
    %1409 = vmatpush1.msra.mxu0 0.0
    %1410 = vmatprep.subr.mxu0 0.0
    %1411 = vmatpush1.msra.mxu0 0.0
    %1412 = vmatprep.subr.mxu0 0.0
    %1413 = vmatpush1.msra.mxu0 0.0
    %1414 = vmatprep.subr.mxu0 0.0
    %1415 = vmatpush1.msra.mxu0 0.0
    %1416 = vmatprep.subr.mxu0 0.0
    %1417 = vmatpush1.msra.mxu0 0.0
    %1418 = vmatprep.subr.mxu0 0.0
    %1419 = vmatpush1.msra.mxu0 0.0
    %1420 = vmatprep.subr.mxu0 0.0
    %1421 = vmatpush1.msra.mxu0 0.0
    %1422 = vmatprep.subr.mxu0 0.0
    %1423 = vmatpush1.msra.mxu0 0.0
    %1424 = vmatprep.subr.mxu0 0.0
    %1425 = vmatpush1.msra.mxu0 0.0
    %1426 = vmatprep.subr.mxu0 0.0
    %1427 = vmatpush1.msra.mxu0 0.0
    %1428 = vmatprep.subr.mxu0 0.0
    %1429 = vmatpush1.msra.mxu0 0.0
    %1430 = vmatprep.subr.mxu0 0.0
    %1431 = vmatpush1.msra.mxu0 0.0
    %1432 = vmatprep.subr.mxu0 0.0
    %1433 = vmatpush1.msra.mxu0 0.0
    %1434 = vmatprep.subr.mxu0 0.0
    %1435 = vmatpush1.msra.mxu0 0.0
    %1436 = vmatprep.subr.mxu0 0.0
    %1437 = vmatpush1.msra.mxu0 0.0
    %1438 = vmatprep.mubr.f32.mxu0 0.0
    %1439 = vmatmul.mubr.f32.gmra.mrb[0].mxu0 %v1372
    %v1440 = vpop.f32.mrb[0].mxu0
    %v1441 = vadd.f32 %v362, %v1440
    %v1442 = vpop.f32.mrb[0].mxu0
    %1443 = vdwg.mxu0
    %v1444 = vadd.f32 %v211, %v1441
    %v1445 = vxor.u32 %v1444, 2147483648
    %v1446 = vmul.f32 %v1445, 1.442695
    %v1447 = vpow.pop %v1446
    %v1448 = vadd.f32 %v1447, 1.0
    %v1449 = vrcp.pop %v1448
    %v1450 = vmul.f32 1.0, %v1449
    %1452 = vrot.lane.b32.xlu0 %v1441, 64
    %v1453 = vpop.permute.xlu0 %1452
    %v1455 = vmul.f32 %v1450, %v1453
    %1457 = vrot.lane.b32.xlu0 %v1455, 64
    %v1458 = vpop.permute.xlu0 %1457
    %v1460 = vadd.f32 %v211, %v1458
    %v1461 = vtanh.pop %v1460
    %v1462 = vsub.f32 1.0, %v1450
    %1464 = vrot.lane.b32.xlu0 %v1461, 96
    %v1465 = vpop.permute.xlu0 %1464
    %v1467 = vmul.f32 %v1462, %v1465
    %v1468 = vmul.f32 %v1450, %v1267
    %v1469 = vadd.f32 %v1467, %v1468
    %1471 = vrot.lane.b32.xlu0 %v1368, 96
    %v1472 = vpop.permute.xlu0 %1471
    %v1473 = vsel %vm105, %v1472, 0
    %1475 = vmatprep.subr.mxu0 0.0
    %1476 = vmatpush1.msra.mxu0 %v243
    %1477 = vmatprep.subr.mxu0 0.0
    %1478 = vmatpush1.msra.mxu0 %v244
    %1479 = vmatprep.subr.mxu0 0.0
    %1480 = vmatpush1.msra.mxu0 %v245
    %1481 = vmatprep.subr.mxu0 0.0
    %1482 = vmatpush1.msra.mxu0 %v246
    %1483 = vmatprep.subr.mxu0 0.0
    %1484 = vmatpush1.msra.mxu0 0.0
    %1485 = vmatprep.subr.mxu0 0.0
    %1486 = vmatpush1.msra.mxu0 0.0
    %1487 = vmatprep.subr.mxu0 0.0
    %1488 = vmatpush1.msra.mxu0 0.0
    %1489 = vmatprep.subr.mxu0 0.0
    %1490 = vmatpush1.msra.mxu0 0.0
    %1491 = vmatprep.subr.mxu0 0.0
    %1492 = vmatpush1.msra.mxu0 0.0
    %1493 = vmatprep.subr.mxu0 0.0
    %1494 = vmatpush1.msra.mxu0 0.0
    %1495 = vmatprep.subr.mxu0 0.0
    %1496 = vmatpush1.msra.mxu0 0.0
    %1497 = vmatprep.subr.mxu0 0.0
    %1498 = vmatpush1.msra.mxu0 0.0
    %1499 = vmatprep.subr.mxu0 0.0
    %1500 = vmatpush1.msra.mxu0 0.0
    %1501 = vmatprep.subr.mxu0 0.0
    %1502 = vmatpush1.msra.mxu0 0.0
    %1503 = vmatprep.subr.mxu0 0.0
    %1504 = vmatpush1.msra.mxu0 0.0
    %1505 = vmatprep.subr.mxu0 0.0
    %1506 = vmatpush1.msra.mxu0 0.0
    %1507 = vmatprep.subr.mxu0 0.0
    %1508 = vmatpush1.msra.mxu0 0.0
    %1509 = vmatprep.subr.mxu0 0.0
    %1510 = vmatpush1.msra.mxu0 0.0
    %1511 = vmatprep.subr.mxu0 0.0
    %1512 = vmatpush1.msra.mxu0 0.0
    %1513 = vmatprep.subr.mxu0 0.0
    %1514 = vmatpush1.msra.mxu0 0.0
    %1515 = vmatprep.subr.mxu0 0.0
    %1516 = vmatpush1.msra.mxu0 0.0
    %1517 = vmatprep.subr.mxu0 0.0
    %1518 = vmatpush1.msra.mxu0 0.0
    %1519 = vmatprep.subr.mxu0 0.0
    %1520 = vmatpush1.msra.mxu0 0.0
    %1521 = vmatprep.subr.mxu0 0.0
    %1522 = vmatpush1.msra.mxu0 0.0
    %1523 = vmatprep.subr.mxu0 0.0
    %1524 = vmatpush1.msra.mxu0 0.0
    %1525 = vmatprep.subr.mxu0 0.0
    %1526 = vmatpush1.msra.mxu0 0.0
    %1527 = vmatprep.subr.mxu0 0.0
    %1528 = vmatpush1.msra.mxu0 0.0
    %1529 = vmatprep.subr.mxu0 0.0
    %1530 = vmatpush1.msra.mxu0 0.0
    %1531 = vmatprep.subr.mxu0 0.0
    %1532 = vmatpush1.msra.mxu0 0.0
    %1533 = vmatprep.subr.mxu0 0.0
    %1534 = vmatpush1.msra.mxu0 0.0
    %1535 = vmatprep.subr.mxu0 0.0
    %1536 = vmatpush1.msra.mxu0 0.0
    %1537 = vmatprep.subr.mxu0 0.0
    %1538 = vmatpush1.msra.mxu0 0.0
    %1539 = vmatprep.mubr.f32.mxu0 0.0
    %1540 = vmatmul.mubr.f32.gmra.mrb[0].mxu0 %v1473
    %v1541 = vpop.f32.mrb[0].mxu0
    %v1542 = vadd.f32 %v257, %v1541
    %v1543 = vpop.f32.mrb[0].mxu0
    %1544 = vdwg.mxu0
    %v1545 = vadd.f32 %v233, %v1542
    %v1546 = vxor.u32 %v1545, 2147483648
    %v1547 = vmul.f32 %v1546, 1.442695
    %v1548 = vpow.pop %v1547
    %v1549 = vadd.f32 %v1548, 1.0
    %v1550 = vrcp.pop %v1549
    %v1551 = vmul.f32 1.0, %v1550
    %1553 = vrot.lane.b32.xlu0 %v1542, 64
    %v1554 = vpop.permute.xlu0 %1553
    %v1556 = vmul.f32 %v1551, %v1554
    %1558 = vrot.lane.b32.xlu0 %v1556, 64
    %v1559 = vpop.permute.xlu0 %1558
    %v1561 = vadd.f32 %v233, %v1559
    %v1562 = vtanh.pop %v1561
    %v1563 = vsub.f32 1.0, %v1551
    %1565 = vrot.lane.b32.xlu0 %v1562, 96
    %v1566 = vpop.permute.xlu0 %1565
    %v1568 = vmul.f32 %v1563, %v1566
    %v1569 = vmul.f32 %v1551, %v1368
    %v1570 = vadd.f32 %v1568, %v1569
    %1572 = vrot.lane.b32.xlu0 %v1469, 96
    %v1573 = vpop.permute.xlu0 %1572
    %v1574 = vsel %vm105, %v1573, 0
    %1576 = vmatprep.subr.mxu0 0.0
    %1577 = vmatpush1.msra.mxu0 %v248
    %1578 = vmatprep.subr.mxu0 0.0
    %1579 = vmatpush1.msra.mxu0 %v249
    %1580 = vmatprep.subr.mxu0 0.0
    %1581 = vmatpush1.msra.mxu0 %v250
    %1582 = vmatprep.subr.mxu0 0.0
    %1583 = vmatpush1.msra.mxu0 %v251
    %1584 = vmatprep.subr.mxu0 0.0
    %1585 = vmatpush1.msra.mxu0 0.0
    %1586 = vmatprep.subr.mxu0 0.0
    %1587 = vmatpush1.msra.mxu0 0.0
    %1588 = vmatprep.subr.mxu0 0.0
    %1589 = vmatpush1.msra.mxu0 0.0
    %1590 = vmatprep.subr.mxu0 0.0
    %1591 = vmatpush1.msra.mxu0 0.0
    %1592 = vmatprep.subr.mxu0 0.0
    %1593 = vmatpush1.msra.mxu0 0.0
    %1594 = vmatprep.subr.mxu0 0.0
    %1595 = vmatpush1.msra.mxu0 0.0
    %1596 = vmatprep.subr.mxu0 0.0
    %1597 = vmatpush1.msra.mxu0 0.0
    %1598 = vmatprep.subr.mxu0 0.0
    %1599 = vmatpush1.msra.mxu0 0.0
    %1600 = vmatprep.subr.mxu0 0.0
    %1601 = vmatpush1.msra.mxu0 0.0
    %1602 = vmatprep.subr.mxu0 0.0
    %1603 = vmatpush1.msra.mxu0 0.0
    %1604 = vmatprep.subr.mxu0 0.0
    %1605 = vmatpush1.msra.mxu0 0.0
    %1606 = vmatprep.subr.mxu0 0.0
    %1607 = vmatpush1.msra.mxu0 0.0
    %1608 = vmatprep.subr.mxu0 0.0
    %1609 = vmatpush1.msra.mxu0 0.0
    %1610 = vmatprep.subr.mxu0 0.0
    %1611 = vmatpush1.msra.mxu0 0.0
    %1612 = vmatprep.subr.mxu0 0.0
    %1613 = vmatpush1.msra.mxu0 0.0
    %1614 = vmatprep.subr.mxu0 0.0
    %1615 = vmatpush1.msra.mxu0 0.0
    %1616 = vmatprep.subr.mxu0 0.0
    %1617 = vmatpush1.msra.mxu0 0.0
    %1618 = vmatprep.subr.mxu0 0.0
    %1619 = vmatpush1.msra.mxu0 0.0
    %1620 = vmatprep.subr.mxu0 0.0
    %1621 = vmatpush1.msra.mxu0 0.0
    %1622 = vmatprep.subr.mxu0 0.0
    %1623 = vmatpush1.msra.mxu0 0.0
    %1624 = vmatprep.subr.mxu0 0.0
    %1625 = vmatpush1.msra.mxu0 0.0
    %1626 = vmatprep.subr.mxu0 0.0
    %1627 = vmatpush1.msra.mxu0 0.0
    %1628 = vmatprep.subr.mxu0 0.0
    %1629 = vmatpush1.msra.mxu0 0.0
    %1630 = vmatprep.subr.mxu0 0.0
    %1631 = vmatpush1.msra.mxu0 0.0
    %1632 = vmatprep.subr.mxu0 0.0
    %1633 = vmatpush1.msra.mxu0 0.0
    %1634 = vmatprep.subr.mxu0 0.0
    %1635 = vmatpush1.msra.mxu0 0.0
    %1636 = vmatprep.subr.mxu0 0.0
    %1637 = vmatpush1.msra.mxu0 0.0
    %1638 = vmatprep.subr.mxu0 0.0
    %1639 = vmatpush1.msra.mxu0 0.0
    %1640 = vmatprep.mubr.f32.mxu0 0.0
    %1641 = vmatmul.mubr.f32.gmra.mrb[0].mxu0 %v1574
    %v1642 = vpop.f32.mrb[0].mxu0
    %v1643 = vadd.f32 %v362, %v1642
    %v1644 = vpop.f32.mrb[0].mxu0
    %1645 = vdwg.mxu0
    %v1646 = vadd.f32 %v205, %v1643
    %v1647 = vxor.u32 %v1646, 2147483648
    %v1648 = vmul.f32 %v1647, 1.442695
    %v1649 = vpow.pop %v1648
    %v1650 = vadd.f32 %v1649, 1.0
    %v1651 = vrcp.pop %v1650
    %v1652 = vmul.f32 1.0, %v1651
    %1654 = vrot.lane.b32.xlu0 %v1643, 64
    %v1655 = vpop.permute.xlu0 %1654
    %v1657 = vmul.f32 %v1652, %v1655
    %1659 = vrot.lane.b32.xlu0 %v1657, 64
    %v1660 = vpop.permute.xlu0 %1659
    %v1662 = vadd.f32 %v205, %v1660
    %v1663 = vtanh.pop %v1662
    %v1664 = vsub.f32 1.0, %v1652
    %1666 = vrot.lane.b32.xlu0 %v1663, 96
    %v1667 = vpop.permute.xlu0 %1666
    %v1669 = vmul.f32 %v1664, %v1667
    %v1670 = vmul.f32 %v1652, %v1469
    %v1671 = vadd.f32 %v1669, %v1670
    %1673 = vrot.lane.b32.xlu0 %v1570, 96
    %v1674 = vpop.permute.xlu0 %1673
    %v1675 = vsel %vm105, %v1674, 0
    %1677 = vmatprep.subr.mxu0 0.0
    %1678 = vmatpush1.msra.mxu0 %v243
    %1679 = vmatprep.subr.mxu0 0.0
    %1680 = vmatpush1.msra.mxu0 %v244
    %1681 = vmatprep.subr.mxu0 0.0
    %1682 = vmatpush1.msra.mxu0 %v245
    %1683 = vmatprep.subr.mxu0 0.0
    %1684 = vmatpush1.msra.mxu0 %v246
    %1685 = vmatprep.subr.mxu0 0.0
    %1686 = vmatpush1.msra.mxu0 0.0
    %1687 = vmatprep.subr.mxu0 0.0
    %1688 = vmatpush1.msra.mxu0 0.0
    %1689 = vmatprep.subr.mxu0 0.0
    %1690 = vmatpush1.msra.mxu0 0.0
    %1691 = vmatprep.subr.mxu0 0.0
    %1692 = vmatpush1.msra.mxu0 0.0
    %1693 = vmatprep.subr.mxu0 0.0
    %1694 = vmatpush1.msra.mxu0 0.0
    %1695 = vmatprep.subr.mxu0 0.0
    %1696 = vmatpush1.msra.mxu0 0.0
    %1697 = vmatprep.subr.mxu0 0.0
    %1698 = vmatpush1.msra.mxu0 0.0
    %1699 = vmatprep.subr.mxu0 0.0
    %1700 = vmatpush1.msra.mxu0 0.0
    %1701 = vmatprep.subr.mxu0 0.0
    %1702 = vmatpush1.msra.mxu0 0.0
    %1703 = vmatprep.subr.mxu0 0.0
    %1704 = vmatpush1.msra.mxu0 0.0
    %1705 = vmatprep.subr.mxu0 0.0
    %1706 = vmatpush1.msra.mxu0 0.0
    %1707 = vmatprep.subr.mxu0 0.0
    %1708 = vmatpush1.msra.mxu0 0.0
    %1709 = vmatprep.subr.mxu0 0.0
    %1710 = vmatpush1.msra.mxu0 0.0
    %1711 = vmatprep.subr.mxu0 0.0
    %1712 = vmatpush1.msra.mxu0 0.0
    %1713 = vmatprep.subr.mxu0 0.0
    %1714 = vmatpush1.msra.mxu0 0.0
    %1715 = vmatprep.subr.mxu0 0.0
    %1716 = vmatpush1.msra.mxu0 0.0
    %1717 = vmatprep.subr.mxu0 0.0
    %1718 = vmatpush1.msra.mxu0 0.0
    %1719 = vmatprep.subr.mxu0 0.0
    %1720 = vmatpush1.msra.mxu0 0.0
    %1721 = vmatprep.subr.mxu0 0.0
    %1722 = vmatpush1.msra.mxu0 0.0
    %1723 = vmatprep.subr.mxu0 0.0
    %1724 = vmatpush1.msra.mxu0 0.0
    %1725 = vmatprep.subr.mxu0 0.0
    %1726 = vmatpush1.msra.mxu0 0.0
    %1727 = vmatprep.subr.mxu0 0.0
    %1728 = vmatpush1.msra.mxu0 0.0
    %1729 = vmatprep.subr.mxu0 0.0
    %1730 = vmatpush1.msra.mxu0 0.0
    %1731 = vmatprep.subr.mxu0 0.0
    %1732 = vmatpush1.msra.mxu0 0.0
    %1733 = vmatprep.subr.mxu0 0.0
    %1734 = vmatpush1.msra.mxu0 0.0
    %1735 = vmatprep.subr.mxu0 0.0
    %1736 = vmatpush1.msra.mxu0 0.0
    %1737 = vmatprep.subr.mxu0 0.0
    %1738 = vmatpush1.msra.mxu0 0.0
    %1739 = vmatprep.subr.mxu0 0.0
    %1740 = vmatpush1.msra.mxu0 0.0
    %1741 = vmatprep.mubr.f32.mxu0 0.0
    %1742 = vmatmul.mubr.f32.gmra.mrb[0].mxu0 %v1675
    %v1743 = vpop.f32.mrb[0].mxu0
    %v1744 = vadd.f32 %v257, %v1743
    %v1745 = vpop.f32.mrb[0].mxu0
    %1746 = vdwg.mxu0
    %v1747 = vadd.f32 %v239, %v1744
    %v1748 = vxor.u32 %v1747, 2147483648
    %v1749 = vmul.f32 %v1748, 1.442695
    %v1750 = vpow.pop %v1749
    %v1751 = vadd.f32 %v1750, 1.0
    %v1752 = vrcp.pop %v1751
    %v1753 = vmul.f32 1.0, %v1752
    %1755 = vrot.lane.b32.xlu0 %v1744, 64
    %v1756 = vpop.permute.xlu0 %1755
    %v1758 = vmul.f32 %v1753, %v1756
    %1760 = vrot.lane.b32.xlu0 %v1758, 64
    %v1761 = vpop.permute.xlu0 %1760
    %v1763 = vadd.f32 %v239, %v1761
    %v1764 = vtanh.pop %v1763
    %v1765 = vsub.f32 1.0, %v1753
    %1767 = vrot.lane.b32.xlu0 %v1764, 96
    %v1768 = vpop.permute.xlu0 %1767
    %v1770 = vmul.f32 %v1765, %v1768
    %v1771 = vmul.f32 %v1753, %v1570
    %v1772 = vadd.f32 %v1770, %v1771
    %1774 = vrot.lane.b32.xlu0 %v1671, 96
    %v1775 = vpop.permute.xlu0 %1774
    %v1776 = vsel %vm105, %v1775, 0
    %1778 = vmatprep.subr.mxu0 0.0
    %1779 = vmatpush1.msra.mxu0 %v248
    %1780 = vmatprep.subr.mxu0 0.0
    %1781 = vmatpush1.msra.mxu0 %v249
    %1782 = vmatprep.subr.mxu0 0.0
    %1783 = vmatpush1.msra.mxu0 %v250
    %1784 = vmatprep.subr.mxu0 0.0
    %1785 = vmatpush1.msra.mxu0 %v251
    %1786 = vmatprep.subr.mxu0 0.0
    %1787 = vmatpush1.msra.mxu0 0.0
    %1788 = vmatprep.subr.mxu0 0.0
    %1789 = vmatpush1.msra.mxu0 0.0
    %1790 = vmatprep.subr.mxu0 0.0
    %1791 = vmatpush1.msra.mxu0 0.0
    %1792 = vmatprep.subr.mxu0 0.0
    %1793 = vmatpush1.msra.mxu0 0.0
    %1794 = vmatprep.subr.mxu0 0.0
    %1795 = vmatpush1.msra.mxu0 0.0
    %1796 = vmatprep.subr.mxu0 0.0
    %1797 = vmatpush1.msra.mxu0 0.0
    %1798 = vmatprep.subr.mxu0 0.0
    %1799 = vmatpush1.msra.mxu0 0.0
    %1800 = vmatprep.subr.mxu0 0.0
    %1801 = vmatpush1.msra.mxu0 0.0
    %1802 = vmatprep.subr.mxu0 0.0
    %1803 = vmatpush1.msra.mxu0 0.0
    %1804 = vmatprep.subr.mxu0 0.0
    %1805 = vmatpush1.msra.mxu0 0.0
    %1806 = vmatprep.subr.mxu0 0.0
    %1807 = vmatpush1.msra.mxu0 0.0
    %1808 = vmatprep.subr.mxu0 0.0
    %1809 = vmatpush1.msra.mxu0 0.0
    %1810 = vmatprep.subr.mxu0 0.0
    %1811 = vmatpush1.msra.mxu0 0.0
    %1812 = vmatprep.subr.mxu0 0.0
    %1813 = vmatpush1.msra.mxu0 0.0
    %1814 = vmatprep.subr.mxu0 0.0
    %1815 = vmatpush1.msra.mxu0 0.0
    %1816 = vmatprep.subr.mxu0 0.0
    %1817 = vmatpush1.msra.mxu0 0.0
    %1818 = vmatprep.subr.mxu0 0.0
    %1819 = vmatpush1.msra.mxu0 0.0
    %1820 = vmatprep.subr.mxu0 0.0
    %1821 = vmatpush1.msra.mxu0 0.0
    %1822 = vmatprep.subr.mxu0 0.0
    %1823 = vmatpush1.msra.mxu0 0.0
    %1824 = vmatprep.subr.mxu0 0.0
    %1825 = vmatpush1.msra.mxu0 0.0
    %1826 = vmatprep.subr.mxu0 0.0
    %1827 = vmatpush1.msra.mxu0 0.0
    %1828 = vmatprep.subr.mxu0 0.0
    %1829 = vmatpush1.msra.mxu0 0.0
    %1830 = vmatprep.subr.mxu0 0.0
    %1831 = vmatpush1.msra.mxu0 0.0
    %1832 = vmatprep.subr.mxu0 0.0
    %1833 = vmatpush1.msra.mxu0 0.0
    %1834 = vmatprep.subr.mxu0 0.0
    %1835 = vmatpush1.msra.mxu0 0.0
    %1836 = vmatprep.subr.mxu0 0.0
    %1837 = vmatpush1.msra.mxu0 0.0
    %1838 = vmatprep.subr.mxu0 0.0
    %1839 = vmatpush1.msra.mxu0 0.0
    %1840 = vmatprep.subr.mxu0 0.0
    %1841 = vmatpush1.msra.mxu0 0.0
    %1842 = vmatprep.mubr.f32.mxu0 0.0
    %1843 = vmatmul.mubr.f32.gmra.mrb[0].mxu0 %v1776
    %v1844 = vpop.f32.mrb[0].mxu0
    %v1845 = vadd.f32 %v362, %v1844
    %v1846 = vpop.f32.mrb[0].mxu0
    %1847 = vdwg.mxu0
    %v1848 = vadd.f32 %v199, %v1845
    %v1849 = vxor.u32 %v1848, 2147483648
    %v1850 = vmul.f32 %v1849, 1.442695
    %v1851 = vpow.pop %v1850
    %v1852 = vadd.f32 %v1851, 1.0
    %v1853 = vrcp.pop %v1852
    %v1854 = vmul.f32 1.0, %v1853
    %1856 = vrot.lane.b32.xlu0 %v1845, 64
    %v1857 = vpop.permute.xlu0 %1856
    %v1859 = vmul.f32 %v1854, %v1857
    %1861 = vrot.lane.b32.xlu0 %v1859, 64
    %v1862 = vpop.permute.xlu0 %1861
    %v1864 = vadd.f32 %v199, %v1862
    %v1865 = vtanh.pop %v1864
    %v1866 = vsub.f32 1.0, %v1854
    %1868 = vrot.lane.b32.xlu0 %v1865, 96
    %v1869 = vpop.permute.xlu0 %1868
    %v1871 = vmul.f32 %v1866, %v1869
    %v1872 = vmul.f32 %v1854, %v1671
    %v1873 = vadd.f32 %v1871, %v1872
    %v1874 = vld [vmem:[#allocation5] sm:$0xff]
    %v1875 = vld [vmem:[#allocation5 + $0x8] sm:$0xff]
    %v1876 = vld [vmem:[#allocation5 + $0x10] sm:$0xff]
    %v1877 = vld [vmem:[#allocation5 + $0x18] sm:$0xff]
    %v1878 = vld [vmem:[#allocation7] sm:$0xff]
    %v1879 = vld [vmem:[#allocation7 + $0x8] sm:$0xff]
    %v1880 = vld [vmem:[#allocation7 + $0x10] sm:$0xff]
    %v1881 = vld [vmem:[#allocation7 + $0x18] sm:$0xff]
    %1883 = vrot.lane.b32.xlu0 %v1873, 96
    %v1884 = vpop.permute.xlu0 %1883
    %v1885 = vsel %vm105, %v1884, 0
    %1887 = vmatprep.subr.mxu0 0.0
    %1888 = vmatpush1.msra.mxu0 %v1878
    %1889 = vmatprep.subr.mxu0 0.0
    %1890 = vmatpush1.msra.mxu0 %v1879
    %1891 = vmatprep.subr.mxu0 0.0
    %1892 = vmatpush1.msra.mxu0 %v1880
    %1893 = vmatprep.subr.mxu0 0.0
    %1894 = vmatpush1.msra.mxu0 %v1881
    %1895 = vmatprep.subr.mxu0 0.0
    %1896 = vmatpush1.msra.mxu0 0.0
    %1897 = vmatprep.subr.mxu0 0.0
    %1898 = vmatpush1.msra.mxu0 0.0
    %1899 = vmatprep.subr.mxu0 0.0
    %1900 = vmatpush1.msra.mxu0 0.0
    %1901 = vmatprep.subr.mxu0 0.0
    %1902 = vmatpush1.msra.mxu0 0.0
    %1903 = vmatprep.subr.mxu0 0.0
    %1904 = vmatpush1.msra.mxu0 0.0
    %1905 = vmatprep.subr.mxu0 0.0
    %1906 = vmatpush1.msra.mxu0 0.0
    %1907 = vmatprep.subr.mxu0 0.0
    %1908 = vmatpush1.msra.mxu0 0.0
    %1909 = vmatprep.subr.mxu0 0.0
    %1910 = vmatpush1.msra.mxu0 0.0
    %1911 = vmatprep.subr.mxu0 0.0
    %1912 = vmatpush1.msra.mxu0 0.0
    %1913 = vmatprep.subr.mxu0 0.0
    %1914 = vmatpush1.msra.mxu0 0.0
    %1915 = vmatprep.subr.mxu0 0.0
    %1916 = vmatpush1.msra.mxu0 0.0
    %1917 = vmatprep.subr.mxu0 0.0
    %1918 = vmatpush1.msra.mxu0 0.0
    %1919 = vmatprep.subr.mxu0 0.0
    %1920 = vmatpush1.msra.mxu0 0.0
    %1921 = vmatprep.subr.mxu0 0.0
    %1922 = vmatpush1.msra.mxu0 0.0
    %1923 = vmatprep.subr.mxu0 0.0
    %1924 = vmatpush1.msra.mxu0 0.0
    %1925 = vmatprep.subr.mxu0 0.0
    %1926 = vmatpush1.msra.mxu0 0.0
    %1927 = vmatprep.subr.mxu0 0.0
    %1928 = vmatpush1.msra.mxu0 0.0
    %1929 = vmatprep.subr.mxu0 0.0
    %1930 = vmatpush1.msra.mxu0 0.0
    %1931 = vmatprep.subr.mxu0 0.0
    %1932 = vmatpush1.msra.mxu0 0.0
    %1933 = vmatprep.subr.mxu0 0.0
    %1934 = vmatpush1.msra.mxu0 0.0
    %1935 = vmatprep.subr.mxu0 0.0
    %1936 = vmatpush1.msra.mxu0 0.0
    %1937 = vmatprep.subr.mxu0 0.0
    %1938 = vmatpush1.msra.mxu0 0.0
    %1939 = vmatprep.subr.mxu0 0.0
    %1940 = vmatpush1.msra.mxu0 0.0
    %1941 = vmatprep.subr.mxu0 0.0
    %1942 = vmatpush1.msra.mxu0 0.0
    %1943 = vmatprep.subr.mxu0 0.0
    %1944 = vmatpush1.msra.mxu0 0.0
    %1945 = vmatprep.subr.mxu0 0.0
    %1946 = vmatpush1.msra.mxu0 0.0
    %1947 = vmatprep.subr.mxu0 0.0
    %1948 = vmatpush1.msra.mxu0 0.0
    %1949 = vmatprep.subr.mxu0 0.0
    %1950 = vmatpush1.msra.mxu0 0.0
    %1951 = vmatprep.mubr.f32.mxu0 0.0
    %1952 = vmatmul.mubr.f32.gmra.mrb[0].mxu0 %v1885
    %v1953 = vpop.f32.mrb[0].mxu0
    %v1954 = vadd.f32 0.0, %v1953
    %v1955 = vpop.f32.mrb[0].mxu0
    %1956 = vmatprep.mubr.f32.mxu0 0.0
    %1957 = vmatmul.mubr.f32.gmra.mrb[0].mxu0 %v1776
    %v1958 = vpop.f32.mrb[0].mxu0
    %v1959 = vadd.f32 0.0, %v1958
    %v1960 = vpop.f32.mrb[0].mxu0
    %1961 = vmatprep.mubr.f32.mxu0 0.0
    %1962 = vmatmul.mubr.f32.gmra.mrb[0].mxu0 %v1574
    %v1963 = vpop.f32.mrb[0].mxu0
    %v1964 = vadd.f32 0.0, %v1963
    %v1965 = vpop.f32.mrb[0].mxu0
    %1966 = vmatprep.mubr.f32.mxu0 0.0
    %1967 = vmatmul.mubr.f32.gmra.mrb[0].mxu0 %v1372
    %v1968 = vpop.f32.mrb[0].mxu0
    %v1969 = vadd.f32 0.0, %v1968
    %v1970 = vpop.f32.mrb[0].mxu0
    %1971 = vmatprep.mubr.f32.mxu0 0.0
    %1972 = vmatmul.mubr.f32.gmra.mrb[0].mxu0 %v1170
    %v1973 = vpop.f32.mrb[0].mxu0
    %v1974 = vadd.f32 0.0, %v1973
    %v1975 = vpop.f32.mrb[0].mxu0
    %1976 = vmatprep.mubr.f32.mxu0 0.0
    %1977 = vmatmul.mubr.f32.gmra.mrb[0].mxu0 %v968
    %v1978 = vpop.f32.mrb[0].mxu0
    %v1979 = vadd.f32 0.0, %v1978
    %v1980 = vpop.f32.mrb[0].mxu0
    %1981 = vmatprep.mubr.f32.mxu0 0.0
    %1982 = vmatmul.mubr.f32.gmra.mrb[0].mxu0 %v766
    %v1983 = vpop.f32.mrb[0].mxu0
    %v1984 = vadd.f32 0.0, %v1983
    %v1985 = vpop.f32.mrb[0].mxu0
    %1986 = vmatprep.mubr.f32.mxu0 0.0
    %1987 = vmatmul.mubr.f32.gmra.mrb[0].mxu0 %v564
    %v1988 = vpop.f32.mrb[0].mxu0
    %v1989 = vadd.f32 0.0, %v1988
    %v1990 = vpop.f32.mrb[0].mxu0
    %1991 = vdwg.mxu0
    %1993 = vrot.lane.b32.xlu0 %v1772, 96
    %v1994 = vpop.permute.xlu0 %1993
    %v1995 = vsel %vm105, %v1994, 0
    %1997 = vmatprep.subr.mxu0 0.0
    %1998 = vmatpush1.msra.mxu0 %v1874
    %1999 = vmatprep.subr.mxu0 0.0
    %2000 = vmatpush1.msra.mxu0 %v1875
    %2001 = vmatprep.subr.mxu0 0.0
    %2002 = vmatpush1.msra.mxu0 %v1876
    %2003 = vmatprep.subr.mxu0 0.0
    %2004 = vmatpush1.msra.mxu0 %v1877
    %2005 = vmatprep.subr.mxu0 0.0
    %2006 = vmatpush1.msra.mxu0 0.0
    %2007 = vmatprep.subr.mxu0 0.0
    %2008 = vmatpush1.msra.mxu0 0.0
    %2009 = vmatprep.subr.mxu0 0.0
    %2010 = vmatpush1.msra.mxu0 0.0
    %2011 = vmatprep.subr.mxu0 0.0
    %2012 = vmatpush1.msra.mxu0 0.0
    %2013 = vmatprep.subr.mxu0 0.0
    %2014 = vmatpush1.msra.mxu0 0.0
    %2015 = vmatprep.subr.mxu0 0.0
    %2016 = vmatpush1.msra.mxu0 0.0
    %2017 = vmatprep.subr.mxu0 0.0
    %2018 = vmatpush1.msra.mxu0 0.0
    %2019 = vmatprep.subr.mxu0 0.0
    %2020 = vmatpush1.msra.mxu0 0.0
    %2021 = vmatprep.subr.mxu0 0.0
    %2022 = vmatpush1.msra.mxu0 0.0
    %2023 = vmatprep.subr.mxu0 0.0
    %2024 = vmatpush1.msra.mxu0 0.0
    %2025 = vmatprep.subr.mxu0 0.0
    %2026 = vmatpush1.msra.mxu0 0.0
    %2027 = vmatprep.subr.mxu0 0.0
    %2028 = vmatpush1.msra.mxu0 0.0
    %2029 = vmatprep.subr.mxu0 0.0
    %2030 = vmatpush1.msra.mxu0 0.0
    %2031 = vmatprep.subr.mxu0 0.0
    %2032 = vmatpush1.msra.mxu0 0.0
    %2033 = vmatprep.subr.mxu0 0.0
    %2034 = vmatpush1.msra.mxu0 0.0
    %2035 = vmatprep.subr.mxu0 0.0
    %2036 = vmatpush1.msra.mxu0 0.0
    %2037 = vmatprep.subr.mxu0 0.0
    %2038 = vmatpush1.msra.mxu0 0.0
    %2039 = vmatprep.subr.mxu0 0.0
    %2040 = vmatpush1.msra.mxu0 0.0
    %2041 = vmatprep.subr.mxu0 0.0
    %2042 = vmatpush1.msra.mxu0 0.0
    %2043 = vmatprep.subr.mxu0 0.0
    %2044 = vmatpush1.msra.mxu0 0.0
    %2045 = vmatprep.subr.mxu0 0.0
    %2046 = vmatpush1.msra.mxu0 0.0
    %2047 = vmatprep.subr.mxu0 0.0
    %2048 = vmatpush1.msra.mxu0 0.0
    %2049 = vmatprep.subr.mxu0 0.0
    %2050 = vmatpush1.msra.mxu0 0.0
    %2051 = vmatprep.subr.mxu0 0.0
    %2052 = vmatpush1.msra.mxu0 0.0
    %2053 = vmatprep.subr.mxu0 0.0
    %2054 = vmatpush1.msra.mxu0 0.0
    %2055 = vmatprep.subr.mxu0 0.0
    %2056 = vmatpush1.msra.mxu0 0.0
    %2057 = vmatprep.subr.mxu0 0.0
    %2058 = vmatpush1.msra.mxu0 0.0
    %2059 = vmatprep.subr.mxu0 0.0
    %2060 = vmatpush1.msra.mxu0 0.0
    %2061 = vmatprep.mubr.f32.mxu0 0.0
    %2062 = vmatmul.mubr.f32.gmra.mrb[0].mxu0 %v463
    %v2063 = vpop.f32.mrb[0].mxu0
    %v2064 = vadd.f32 %v1954, %v2063
    %v2065 = vpop.f32.mrb[0].mxu0
    %2066 = vmatprep.mubr.f32.mxu0 0.0
    %2067 = vmatmul.mubr.f32.gmra.mrb[0].mxu0 %v665
    %v2068 = vpop.f32.mrb[0].mxu0
    %v2069 = vadd.f32 %v1959, %v2068
    %v2070 = vpop.f32.mrb[0].mxu0
    %2071 = vmatprep.mubr.f32.mxu0 0.0
    %2072 = vmatmul.mubr.f32.gmra.mrb[0].mxu0 %v867
    %v2073 = vpop.f32.mrb[0].mxu0
    %v2074 = vadd.f32 %v1964, %v2073
    %v2075 = vpop.f32.mrb[0].mxu0
    %2076 = vmatprep.mubr.f32.mxu0 0.0
    %2077 = vmatmul.mubr.f32.gmra.mrb[0].mxu0 %v1069
    %v2078 = vpop.f32.mrb[0].mxu0
    %v2079 = vadd.f32 %v1969, %v2078
    %v2080 = vpop.f32.mrb[0].mxu0
    %2081 = vmatprep.mubr.f32.mxu0 0.0
    %2082 = vmatmul.mubr.f32.gmra.mrb[0].mxu0 %v1271
    %v2083 = vpop.f32.mrb[0].mxu0
    %v2084 = vadd.f32 %v1974, %v2083
    %v2085 = vpop.f32.mrb[0].mxu0
    %2086 = vmatprep.mubr.f32.mxu0 0.0
    %2087 = vmatmul.mubr.f32.gmra.mrb[0].mxu0 %v1473
    %v2088 = vpop.f32.mrb[0].mxu0
    %v2089 = vadd.f32 %v1979, %v2088
    %v2090 = vpop.f32.mrb[0].mxu0
    %2091 = vmatprep.mubr.f32.mxu0 0.0
    %2092 = vmatmul.mubr.f32.gmra.mrb[0].mxu0 %v1675
    %v2093 = vpop.f32.mrb[0].mxu0
    %v2094 = vadd.f32 %v1984, %v2093
    %v2095 = vpop.f32.mrb[0].mxu0
    %2096 = vmatprep.mubr.f32.mxu0 0.0
    %2097 = vmatmul.mubr.f32.gmra.mrb[0].mxu0 %v1995
    %v2098 = vpop.f32.mrb[0].mxu0
    %v2099 = vadd.f32 %v1989, %v2098
    %v2100 = vpop.f32.mrb[0].mxu0
    %2101 = vdwg.mxu0
    %v2102 = vld [vmem:[%s9] sm:$0x1]
    %v2104 = vlaneseq
    %v2105 = vshrl.u32 %v2104, 7
    %v2106 = vsub.s32 0, %v2105
    %v2107 = vrot.slane %v2102, %v2106
    %v2109 = vadd.f32 %v2064, %v2107
    %v2110 = vadd.f32 %v2069, %v2107
    %v2111 = vadd.f32 %v2074, %v2107
    %v2112 = vadd.f32 %v2079, %v2107
    %v2113 = vadd.f32 %v2084, %v2107
    %v2114 = vadd.f32 %v2089, %v2107
    %v2115 = vadd.f32 %v2094, %v2107
    %v2116 = vadd.f32 %v2099, %v2107
    %2117 = vst [vmem:[#allocation8] sm:$0xff] %v2109
    %2118 = vst [vmem:[#allocation8 + $0x8] sm:$0xff] %v2110
    %2119 = vst [vmem:[#allocation8 + $0x10] sm:$0xff] %v2111
    %2120 = vst [vmem:[#allocation8 + $0x18] sm:$0xff] %v2112
    %2121 = vst [vmem:[#allocation8 + $0x20] sm:$0xff] %v2113
    %2122 = vst [vmem:[#allocation8 + $0x28] sm:$0xff] %v2114
    %2123 = vst [vmem:[#allocation8 + $0x30] sm:$0xff] %v2115
    %2124 = vst [vmem:[#allocation8 + $0x38] sm:$0xff] %v2116
    // Predicated region
    $region54: #{tpu_custom_call.1} parent=1 // pred_check
      _
    $region55: #{tpu_custom_call.1} parent=1 // pred_check_branch
      %2126 = sbr.rel (0) target = $region57
    $region56: #{tpu_custom_call.1} parent=1 // pred_region
      %s2128 = ssub.s32 1024, 1024
      %2129 = vsyncadd [#allocation4], %s2128
      %s2130 = sshll.u32 [#allocation8], 4
      %s2131 = int_to_ptr.vmem [resolvable:$true] %s2130
      %2136 = dma.vmem_to_hbm [thread:$0]  %s2131, 1024, %s10, [#allocation4], 128, 128, 8
    $region57: #{tpu_custom_call.1} parent=1 // pred_fallthru
      _
    // Predicated region
    $region58: #{tpu_custom_call.1} parent=1 // pred_check
      _
    $region59: #{tpu_custom_call.1} parent=1 // pred_check_branch
      %2138 = sbr.rel (0) target = $region61
    $region60: #{tpu_custom_call.1} parent=1 // pred_region
      %2139 = dma.done [#allocation4], 1024
    $region61: #{tpu_custom_call.1} parent=1 // pred_fallthru
      _
    %2140 = vsyncpa [#allocation3], 1
    %2141 = vsyncpa [#allocation6], 1
    %2142 = vsyncpa [#allocation4], 1

</llo_original>
